<compile_context>
chip_gen: v7x
topology: tpu7x:2x2x1
jax: 0.10.0
libtpu: 0.0.40
codegen_flags: <defaults>
</compile_context>

<pallas_src>
import functools
import math

import jax
import jax.numpy as jnp
from jax.experimental import pallas as pl
from jax.experimental.pallas import tpu as pltpu

ACT_DTYPE = jnp.bfloat16               # MXU-native input dtype (f32 accumulation)
VMEM_LIMIT_BYTES = 48 * 1024 * 1024    # safe under v7x's 64 MiB; v5e/v6e could raise


def _compiler_params():
    return pltpu.CompilerParams(dimension_semantics=("parallel",),
                                vmem_limit_bytes=VMEM_LIMIT_BYTES)


# ----------------------------------------------------------------------------
# Fused Inception-ResNet block: ONE kernel per block, grid over batch.
# ----------------------------------------------------------------------------
def _inception_block_kernel(*refs, h, w, branches, scale, act):
    n_convs = sum(len(br["convs"]) for br in branches)
    x_ref, we_ref, be_ref = refs[0], refs[1], refs[2]
    conv_refs = [(refs[3 + 2 * j], refs[4 + 2 * j]) for j in range(n_convs)]
    wf_ref = refs[3 + 2 * n_convs]
    bf_ref = refs[4 + 2 * n_convs]
    o_ref = refs[5 + 2 * n_convs]
    cat_ref = refs[6 + 2 * n_convs]
    pad_refs = refs[7 + 2 * n_convs:]

    x = x_ref[...]                                              # (HW, Cin) bf16
    # (1) All branch-entry 1x1 convs fused into a single wide matmul.
    y = jnp.dot(x, we_ref[...], preferred_element_type=jnp.float32) + be_ref[...]
    y = jnp.maximum(y, 0.0)                                     # (HW, Ce) f32

    # (2) Tiny branch convs, intermediates held entirely in VMEM scratch.
    conv_i = 0
    ch_off = 0
    cat_off = 0
    for br in branches:
        bc = br["cin"]
        cur = y[:, ch_off:ch_off + bc]                          # dense (HW, bc) f32
        ch_off += bc
        wg = w                                                  # row-grid width of `cur`
        for (kh, kw, ph, pw, ci, co) in br["convs"]:
            wp = w + 2 * pw
            w_ref, b_ref = conv_refs[conv_i]
            pad_ref = pad_refs[conv_i]
            conv_i += 1
            # Zero-filled halo scratch; write the valid rows of `cur` into it.
            pad_ref[...] = jnp.zeros_like(pad_ref)
            for i in range(h):
                dst = (i + ph) * wp + pw
                pad_ref[dst:dst + w, :] = cur[i * wg:i * wg + w, :]
            # Implicit im2col: every tap is a contiguous row-slice of the scratch.
            m = h * wp
            acc = jnp.zeros((m, co), jnp.float32)
            for t in range(kh * kw):
                start = (t // kw) * wp + (t % kw)
                acc = acc + jnp.dot(pad_ref[start:start + m, :], w_ref[t],
                                    preferred_element_type=jnp.float32)
            cur = jnp.maximum(acc + b_ref[...], 0.0)            # (h*wp, co) f32
            wg = wp
        # Deposit the branch result (valid rows only) into the lane-concat scratch;
        # the channel concat therefore never exists as an HBM tensor.
        co_b = cur.shape[-1]
        if wg == w:
            cat_ref[:, cat_off:cat_off + co_b] = cur.astype(cat_ref.dtype)
        else:
            for i in range(h):
                cat_ref[i * w:(i + 1) * w, cat_off:cat_off + co_b] = (
                    cur[i * wg:i * wg + w, :].astype(cat_ref.dtype))
        cat_off += co_b

    # (3) Final 1x1 as ONE lane-concatenated matmul, fused with bias, scaled
    #     residual add and optional ReLU.  Output store is dense.
    res = jnp.dot(cat_ref[...], wf_ref[...], preferred_element_type=jnp.float32)
    out = x.astype(jnp.float32) + scale * (res + bf_ref[...])
    if act:
        out = jnp.maximum(out, 0.0)
    o_ref[...] = out.astype(o_ref.dtype)


def apply_inception(p, x):
    """One fused Pallas kernel per Inception-ResNet block (grid over batch)."""
    n, h, w, cin = x.shape
    hw = h * w
    x_flat = x.reshape(n, hw, cin)
    branches = p["branches"]
    ce = p["entry_w"].shape[1]
    ck = p["final_w"].shape[0]

    args = [x_flat, p["entry_w"], p["entry_b"]]
    in_specs = [
        pl.BlockSpec((None, hw, cin), lambda i: (i, 0, 0)),
        pl.BlockSpec((cin, ce), lambda i: (0, 0)),
        pl.BlockSpec((1, ce), lambda i: (0, 0)),
    ]
    for cw, cb in p["conv_params"]:
        args += [cw, cb]
        in_specs += [pl.BlockSpec(cw.shape, lambda i: (0, 0, 0)),
                     pl.BlockSpec(cb.shape, lambda i: (0, 0))]
    args += [p["final_w"], p["final_b"]]
    in_specs += [pl.BlockSpec((ck, cin), lambda i: (0, 0)),
                 pl.BlockSpec((1, cin), lambda i: (0, 0))]

    # Scratch: lane-concat buffer + one small halo buffer per branch conv.
    scratch = [pltpu.VMEM((hw, ck), ACT_DTYPE)]
    for br in branches:
        for (kh, kw_, ph, pw, ci, co) in br["convs"]:
            wp = w + 2 * pw
            scratch.append(pltpu.VMEM(((h + 2 * ph + 1) * wp, ci), jnp.float32))

    kernel = functools.partial(_inception_block_kernel, h=h, w=w,
                               branches=branches, scale=p["scale"], act=p["act"])
    out = pl.pallas_call(
        kernel,
        out_shape=jax.ShapeDtypeStruct((n, hw, cin), ACT_DTYPE),
        grid=(n,),
        in_specs=in_specs,
        out_specs=pl.BlockSpec((None, hw, cin), lambda i: (i, 0, 0)),
        scratch_shapes=scratch,
        compiler_params=_compiler_params(),
    )(*args)
    return out.reshape(n, h, w, cin)


# ----------------------------------------------------------------------------
# Strided 3x3 Conv2d block (stem / reductions): one kernel per conv.
# ----------------------------------------------------------------------------
def _strided_conv_kernel(x_ref, w_ref, b_ref, o_ref, acc_ref, *, starts, m, ho, wo, wp):
    acc_ref[...] = jnp.zeros_like(acc_ref)               # f32 VMEM accumulator
    for t, start in enumerate(starts):
        acc_ref[...] += jnp.dot(x_ref[start:start + m, :], w_ref[t],
                                preferred_element_type=jnp.float32)
    y = jnp.maximum(acc_ref[...] + b_ref[...], 0.0).astype(o_ref.dtype)
    if wp == wo:
        o_ref[...] = y
    else:
        for i in range(ho):                               # crop junk columns in-kernel
            o_ref[i * wo:(i + 1) * wo, :] = y[i * wp:i * wp + wo, :]


def conv_strided(x, p):
    """3x3 stride-2 pad-1 Conv2d block.  Space-to-depth phase expansion in the
    wrapper turns it into a stride-1 conv whose taps are contiguous row slices."""
    # TODO(synk): phase expansion still runs as an XLA relayout outside Pallas.
    kh, kw = p["ksize"]
    sh, sw = p["stride"]
    ph, pw = p["pad"]
    n, h, w, c = x.shape
    ho = (h + 2 * ph - kh) // sh + 1
    wo = (w + 2 * pw - kw) // sw + 1
    hp2 = ho + (kh - 1) // sh
    wp2 = wo + (kw - 1) // sw
    hp_t, wp_t = sh * hp2, sw * wp2
    pad_b = max(hp_t - (h + ph), 0)
    pad_r = max(wp_t - (w + pw), 0)
    xp = jnp.pad(x, ((0, 0), (ph, pad_b), (pw, pad_r), (0, 0)))[:, :hp_t, :wp_t, :]
    xp = xp.reshape(n, hp2, sh, wp2, sw, c).transpose(0, 2, 4, 1, 3, 5)
    x_flat = xp.reshape(n, sh * sw * hp2 * wp2, c)
    x_flat = jnp.pad(x_flat, ((0, 0), (0, wp2), (0, 0)))        # guard rows (zeros)
    starts = tuple((((i % sh) * sw + (j % sw)) * hp2 + i // sh) * wp2 + j // sw
                   for i in range(kh) for j in range(kw))
    m = ho * wp2
    cout = p["w"].shape[-1]
    rows = x_flat.shape[1]

    out = pl.pallas_call(
        functools.partial(_strided_conv_kernel, starts=starts, m=m,
                          ho=ho, wo=wo, wp=wp2),
        out_shape=jax.ShapeDtypeStruct((n, ho * wo, cout), ACT_DTYPE),
        grid=(n,),
        in_specs=[pl.BlockSpec((None, rows, c), lambda i: (i, 0, 0)),
                  pl.BlockSpec(p["w"].shape, lambda i: (0, 0, 0)),
                  pl.BlockSpec((1, cout), lambda i: (0, 0))],
        out_specs=pl.BlockSpec((None, ho * wo, cout), lambda i: (i, 0, 0)),
        scratch_shapes=[pltpu.VMEM((m, cout), jnp.float32)],
        compiler_params=_compiler_params(),
    )(x_flat, p["w"], p["b"])
    return out.reshape(n, ho, wo, cout)


# ----------------------------------------------------------------------------
# Head: fused 1x1 conv + ReLU + global-avg-pool, then one batched Linear matmul.
# ----------------------------------------------------------------------------
def _head_pool_kernel(x_ref, w_ref, b_ref, o_ref, *, inv_hw):
    y = jnp.dot(x_ref[...], w_ref[...], preferred_element_type=jnp.float32)
    y = jnp.maximum(y + b_ref[...], 0.0)                         # (HW, 192) f32
    o_ref[...] = jnp.sum(y, axis=0, keepdims=True) * inv_hw      # fused GAP


def _linear_kernel(x_ref, w_ref, b_ref, o_ref):
    x = x_ref[...].astype(w_ref.dtype)
    o_ref[...] = (jnp.dot(x, w_ref[...], preferred_element_type=jnp.float32)
                  + b_ref[...])


def head_forward(x, head_conv, linear_w, linear_b):
    # TODO(synk): Dropout(0.2) is identity (inference mode).
    n, h, w, c = x.shape
    hw = h * w
    x_flat = x.reshape(n, hw, c)
    wh = head_conv["w"][0]                  # (260, 192)
    bh = head_conv["b"]                     # (1, 192) f32
    pooled = pl.pallas_call(
        functools.partial(_head_pool_kernel, inv_hw=1.0 / float(hw)),
        out_shape=jax.ShapeDtypeStruct((n, 1, wh.shape[-1]), jnp.float32),
        grid=(n,),
        in_specs=[pl.BlockSpec((None, hw, c), lambda i: (i, 0, 0)),
                  pl.BlockSpec(wh.shape, lambda i: (0, 0)),
                  pl.BlockSpec(bh.shape, lambda i: (0, 0))],
        out_specs=pl.BlockSpec((None, 1, wh.shape[-1]), lambda i: (i, 0, 0)),
        compiler_params=_compiler_params(),
    )(x_flat, wh, bh)
    pooled = pooled.reshape(n, wh.shape[-1])

    classes = linear_w.shape[-1]
    logits = pl.pallas_call(
        _linear_kernel,
        out_shape=jax.ShapeDtypeStruct((n, classes), jnp.float32),
        grid=(1,),
        in_specs=[pl.BlockSpec(pooled.shape, lambda i: (0, 0)),
                  pl.BlockSpec(linear_w.shape, lambda i: (0, 0)),
                  pl.BlockSpec(linear_b.shape, lambda i: (0, 0))],
        out_specs=pl.BlockSpec((n, classes), lambda i: (0, 0)),
        compiler_params=_compiler_params(),
    )(pooled, linear_w, linear_b)
    return logits


# ----------------------------------------------------------------------------
# Parameter construction (deterministic, synthetic; BN folded into w/b).
# ----------------------------------------------------------------------------
def _conv_params(key, cin, cout, ksize, padding, stride=(1, 1)):
    kh, kw = ksize if isinstance(ksize, tuple) else (ksize, ksize)
    pad = padding if isinstance(padding, tuple) else (padding, padding)
    k_w, k_b = jax.random.split(key)
    std = 1.0 / math.sqrt(kh * kw * cin)
    w = (jax.random.normal(k_w, (kh * kw, cin, cout), jnp.float32) * std).astype(ACT_DTYPE)
    b = jax.random.normal(k_b, (1, cout), jnp.float32) * 0.01
    return {"w": w, "b": b, "ksize": (kh, kw), "stride": stride, "pad": pad}


def _make_inception(key, cin, branch_defs, scale, act):
    """branch_defs: tuple of (entry_cout, conv_specs); conv spec = (kh,kw,ph,pw,ci,co)."""
    n_convs = sum(len(cs) for _, cs in branch_defs)
    keys = iter(jax.random.split(key, 2 + n_convs))
    ce = sum(e for e, _ in branch_defs)
    kwk, kbk = jax.random.split(next(keys))
    entry_w = (jax.random.normal(kwk, (cin, ce), jnp.float32)
               / math.sqrt(cin)).astype(ACT_DTYPE)
    entry_b = jax.random.normal(kbk, (1, ce), jnp.float32) * 0.01
    conv_params, branches, ck = [], [], 0
    for e, cs in branch_defs:
        branches.append({"cin": e, "convs": tuple(cs)})
        last = e
        for (kh, kw_, ph, pw, ci, co) in cs:
            kwk2, kbk2 = jax.random.split(next(keys))
            stdc = 1.0 / math.sqrt(kh * kw_ * ci)
            w = jax.random.normal(kwk2, (kh * kw_, ci, co), jnp.float32) * stdc
            b = jax.random.normal(kbk2, (1, co), jnp.float32) * 0.01
            conv_params.append((w, b))           # tiny branch convs stay f32 in VMEM
            last = co
        ck += last
    kwf, kbf = jax.random.split(next(keys))
    final_w = (jax.random.normal(kwf, (ck, cin), jnp.float32)
               / math.sqrt(ck)).astype(ACT_DTYPE)
    final_b = jax.random.normal(kbf, (1, cin), jnp.float32) * 0.01
    return {"entry_w": entry_w, "entry_b": entry_b, "branches": tuple(branches),
            "conv_params": conv_params, "final_w": final_w, "final_b": final_b,
            "scale": float(scale), "act": bool(act)}


def make_inception_a(key, cin):
    return _make_inception(key, cin,
                           ((4, ()),
                            (4, ((3, 3, 1, 1, 4, 4),)),
                            (4, ((3, 3, 1, 1, 4, 6), (3, 3, 1, 1, 6, 8)))),
                           0.17, True)


def make_inception_b(key, cin):
    return _make_inception(key, cin,
                           ((24, ()),
                            (16, ((1, 7, 0, 3, 16, 20), (7, 1, 3, 0, 20, 24)))),
                           0.1, True)


def make_inception_c(key, cin, activation=True):
    return _make_inception(key, cin,
                           ((24, ()),
                            (24, ((1, 3, 0, 1, 24, 28), (3, 1, 1, 0, 28, 32)))),
                           0.2, activation)


def make_model(key, in_channels=3, classes=100, s0_depth=10, s1_depth=20, s2_depth=10):
    nkeys = 5 + s0_depth + s1_depth + s2_depth
    keys = iter(jax.random.split(key, nkeys))
    params = {}
    # TODO(synk): SmallStem / Small_Reduction internals were not provided; approximated
    # as a single 3x3 stride-2 pad-1 Conv2d block matching the reference channel counts.
    params["stem"] = _conv_params(next(keys), in_channels, 40, 3, 1, stride=(2, 2))
    params["stage_a"] = [make_inception_a(next(keys), 40) for _ in range(s0_depth)]
    params["red0"] = _conv_params(next(keys), 40, 136, 3, 1, stride=(2, 2))
    params["stage_b"] = [make_inception_b(next(keys), 136) for _ in range(s1_depth)]
    params["red1"] = _conv_params(next(keys), 136, 260, 3, 1, stride=(2, 2))
    stage_c = [make_inception_c(next(keys), 260, True) for _ in range(max(s2_depth - 1, 0))]
    if s2_depth > 0:
        stage_c.append(make_inception_c(next(keys), 260, activation=False))
    params["stage_c"] = stage_c
    params["head_conv"] = _conv_params(next(keys), 260, 192, 1, 0)
    klw, klb = jax.random.split(next(keys))
    params["linear_w"] = (jax.random.normal(klw, (192, classes), jnp.float32)
                          / math.sqrt(192.0)).astype(ACT_DTYPE)
    params["linear_b"] = jax.random.normal(klb, (1, classes), jnp.float32) * 0.01
    return params


def apply_model(params, x_nchw):
    x = jnp.transpose(x_nchw, (0, 2, 3, 1)).astype(ACT_DTYPE)   # NCHW -> NHWC, bf16
    x = conv_strided(x, params["stem"])
    for blk in params["stage_a"]:
        x = apply_inception(blk, x)
    x = conv_strided(x, params["red0"])
    for blk in params["stage_b"]:
        x = apply_inception(blk, x)
    x = conv_strided(x, params["red1"])
    for blk in params["stage_c"]:
        x = apply_inception(blk, x)
    return head_forward(x, params["head_conv"],
                        params["linear_w"], params["linear_b"])   # [N, classes] f32


# ----------------------------------------------------------------------------
if __name__ == "__main__":
    key = jax.random.PRNGKey(0)
    k_in, k_params = jax.random.split(key)

    # Small, shape-consistent configuration: batch=2, 3x16x16 input, shallow stages.
    x = jax.random.normal(k_in, (2, 3, 16, 16), jnp.float32)     # NCHW, like PyTorch
    params = make_model(k_params, in_channels=3, classes=10,
                        s0_depth=1, s1_depth=1, s2_depth=2)

    out = jax.block_until_ready(apply_model(params, x))

    assert out.shape == (2, 10), out.shape
    assert bool(jnp.all(jnp.isfinite(out)))
    print("KERNEL_OK")
</pallas_src>

<mosaic_0001>
module attributes {stable_mosaic.version = 11 : i64} {
  func.func @_strided_conv_kernel(%arg0: i32, %arg1: memref<1x333x3xbf16, #tpu.memory_space<vmem>>, %arg2: memref<9x3x40xbf16, #tpu.memory_space<vmem>>, %arg3: memref<1x40xf32, #tpu.memory_space<vmem>>, %arg4: memref<1x64x40xbf16, #tpu.memory_space<vmem>>, %arg5: memref<72x40xf32, #tpu.memory_space<vmem>>) attributes {dimension_semantics = [#tpu.dimension_semantics<parallel>], iteration_bounds = array<i64: 2>, scalar_prefetch = 0 : i64, scratch_operands = 1 : i64, tpu.core_type = #tpu.core_type<tc>, window_params = [{transform_indices = @transform_0, window_bounds = array<i64: 1, 333, 3>}, {pipeline_mode = #tpu.pipeline_mode<synchronous>, transform_indices = @transform_1, window_bounds = array<i64: 9, 3, 40>}, {pipeline_mode = #tpu.pipeline_mode<synchronous>, transform_indices = @transform_2, window_bounds = array<i64: 1, 40>}, {transform_indices = @transform_3, window_bounds = array<i64: 1, 64, 40>}]} {
    %cst = arith.constant 0.000000e+00 : f32
    %0 = vector.broadcast %cst : f32 to vector<72x40xf32>
    %c0 = arith.constant 0 : index
    %c0_0 = arith.constant 0 : index
    %1 = vector.load %arg5[%c0, %c0_0] : memref<72x40xf32, #tpu.memory_space<vmem>>, vector<72x40xf32>
    tpu.vector_store %arg5[%c0, %c0_0], %0 {strides = array<i32>} : memref<72x40xf32, #tpu.memory_space<vmem>>, vector<72x40xf32>,
    %c0_1 = arith.constant 0 : index
    %c0_2 = arith.constant 0 : index
    %2 = vector.load %arg5[%c0_1, %c0_2] : memref<72x40xf32, #tpu.memory_space<vmem>>, vector<72x40xf32>
    %c0_3 = arith.constant 0 : index
    %c0_4 = arith.constant 0 : index
    %c0_5 = arith.constant 0 : index
    %3 = vector.load %arg1[%c0_3, %c0_4, %c0_5] : memref<1x333x3xbf16, #tpu.memory_space<vmem>>, vector<1x72x3xbf16>
    %4 = vector.shape_cast %3 : vector<1x72x3xbf16> to vector<72x3xbf16>
    %c0_6 = arith.constant 0 : index
    %c0_7 = arith.constant 0 : index
    %c0_8 = arith.constant 0 : index
    %5 = vector.load %arg2[%c0_6, %c0_7, %c0_8] : memref<9x3x40xbf16, #tpu.memory_space<vmem>>, vector<1x3x40xbf16>
    %6 = vector.shape_cast %5 : vector<1x3x40xbf16> to vector<3x40xbf16>
    %cst_9 = arith.constant dense<0.000000e+00> : vector<72x40xf32>
    %7 = tpu.matmul %4, %6, %cst_9 {dimension_numbers = #tpu.dot_dimension_numbers<[1], [0], [0], [1], [0, 0, 1, 1], [], []>} : vector<72x3xbf16>, vector<3x40xbf16>, vector<72x40xf32> -> vector<72x40xf32>
    %8 = arith.addf %2, %7 : vector<72x40xf32>
    %c0_10 = arith.constant 0 : index
    %c0_11 = arith.constant 0 : index
    %9 = vector.load %arg5[%c0_10, %c0_11] : memref<72x40xf32, #tpu.memory_space<vmem>>, vector<72x40xf32>
    tpu.vector_store %arg5[%c0_10, %c0_11], %8 {strides = array<i32>} : memref<72x40xf32, #tpu.memory_space<vmem>>, vector<72x40xf32>,
    %c0_12 = arith.constant 0 : index
    %c0_13 = arith.constant 0 : index
    %10 = vector.load %arg5[%c0_12, %c0_13] : memref<72x40xf32, #tpu.memory_space<vmem>>, vector<72x40xf32>
    %c0_14 = arith.constant 0 : index
    %c81 = arith.constant 81 : index
    %c0_15 = arith.constant 0 : index
    %11 = vector.load %arg1[%c0_14, %c81, %c0_15] : memref<1x333x3xbf16, #tpu.memory_space<vmem>>, vector<1x72x3xbf16>
    %12 = vector.shape_cast %11 : vector<1x72x3xbf16> to vector<72x3xbf16>
    %c1 = arith.constant 1 : index
    %c0_16 = arith.constant 0 : index
    %c0_17 = arith.constant 0 : index
    %13 = vector.load %arg2[%c1, %c0_16, %c0_17] : memref<9x3x40xbf16, #tpu.memory_space<vmem>>, vector<1x3x40xbf16>
    %14 = vector.shape_cast %13 : vector<1x3x40xbf16> to vector<3x40xbf16>
    %cst_18 = arith.constant dense<0.000000e+00> : vector<72x40xf32>
    %15 = tpu.matmul %12, %14, %cst_18 {dimension_numbers = #tpu.dot_dimension_numbers<[1], [0], [0], [1], [0, 0, 1, 1], [], []>} : vector<72x3xbf16>, vector<3x40xbf16>, vector<72x40xf32> -> vector<72x40xf32>
    %16 = arith.addf %10, %15 : vector<72x40xf32>
    %c0_19 = arith.constant 0 : index
    %c0_20 = arith.constant 0 : index
    %17 = vector.load %arg5[%c0_19, %c0_20] : memref<72x40xf32, #tpu.memory_space<vmem>>, vector<72x40xf32>
    tpu.vector_store %arg5[%c0_19, %c0_20], %16 {strides = array<i32>} : memref<72x40xf32, #tpu.memory_space<vmem>>, vector<72x40xf32>,
    %c0_21 = arith.constant 0 : index
    %c0_22 = arith.constant 0 : index
    %18 = vector.load %arg5[%c0_21, %c0_22] : memref<72x40xf32, #tpu.memory_space<vmem>>, vector<72x40xf32>
    %c0_23 = arith.constant 0 : index
    %c1_24 = arith.constant 1 : index
    %c0_25 = arith.constant 0 : index
    %19 = vector.load %arg1[%c0_23, %c1_24, %c0_25] : memref<1x333x3xbf16, #tpu.memory_space<vmem>>, vector<1x72x3xbf16>
    %20 = vector.shape_cast %19 : vector<1x72x3xbf16> to vector<72x3xbf16>
    %c2 = arith.constant 2 : index
    %c0_26 = arith.constant 0 : index
    %c0_27 = arith.constant 0 : index
    %21 = vector.load %arg2[%c2, %c0_26, %c0_27] : memref<9x3x40xbf16, #tpu.memory_space<vmem>>, vector<1x3x40xbf16>
    %22 = vector.shape_cast %21 : vector<1x3x40xbf16> to vector<3x40xbf16>
    %cst_28 = arith.constant dense<0.000000e+00> : vector<72x40xf32>
    %23 = tpu.matmul %20, %22, %cst_28 {dimension_numbers = #tpu.dot_dimension_numbers<[1], [0], [0], [1], [0, 0, 1, 1], [], []>} : vector<72x3xbf16>, vector<3x40xbf16>, vector<72x40xf32> -> vector<72x40xf32>
    %24 = arith.addf %18, %23 : vector<72x40xf32>
    %c0_29 = arith.constant 0 : index
    %c0_30 = arith.constant 0 : index
    %25 = vector.load %arg5[%c0_29, %c0_30] : memref<72x40xf32, #tpu.memory_space<vmem>>, vector<72x40xf32>
    tpu.vector_store %arg5[%c0_29, %c0_30], %24 {strides = array<i32>} : memref<72x40xf32, #tpu.memory_space<vmem>>, vector<72x40xf32>,
    %c0_31 = arith.constant 0 : index
    %c0_32 = arith.constant 0 : index
    %26 = vector.load %arg5[%c0_31, %c0_32] : memref<72x40xf32, #tpu.memory_space<vmem>>, vector<72x40xf32>
    %c0_33 = arith.constant 0 : index
    %c162 = arith.constant 162 : index
    %c0_34 = arith.constant 0 : index
    %27 = vector.load %arg1[%c0_33, %c162, %c0_34] : memref<1x333x3xbf16, #tpu.memory_space<vmem>>, vector<1x72x3xbf16>
    %28 = vector.shape_cast %27 : vector<1x72x3xbf16> to vector<72x3xbf16>
    %c3 = arith.constant 3 : index
    %c0_35 = arith.constant 0 : index
    %c0_36 = arith.constant 0 : index
    %29 = vector.load %arg2[%c3, %c0_35, %c0_36] : memref<9x3x40xbf16, #tpu.memory_space<vmem>>, vector<1x3x40xbf16>
    %30 = vector.shape_cast %29 : vector<1x3x40xbf16> to vector<3x40xbf16>
    %cst_37 = arith.constant dense<0.000000e+00> : vector<72x40xf32>
    %31 = tpu.matmul %28, %30, %cst_37 {dimension_numbers = #tpu.dot_dimension_numbers<[1], [0], [0], [1], [0, 0, 1, 1], [], []>} : vector<72x3xbf16>, vector<3x40xbf16>, vector<72x40xf32> -> vector<72x40xf32>
    %32 = arith.addf %26, %31 : vector<72x40xf32>
    %c0_38 = arith.constant 0 : index
    %c0_39 = arith.constant 0 : index
    %33 = vector.load %arg5[%c0_38, %c0_39] : memref<72x40xf32, #tpu.memory_space<vmem>>, vector<72x40xf32>
    tpu.vector_store %arg5[%c0_38, %c0_39], %32 {strides = array<i32>} : memref<72x40xf32, #tpu.memory_space<vmem>>, vector<72x40xf32>,
    %c0_40 = arith.constant 0 : index
    %c0_41 = arith.constant 0 : index
    %34 = vector.load %arg5[%c0_40, %c0_41] : memref<72x40xf32, #tpu.memory_space<vmem>>, vector<72x40xf32>
    %c0_42 = arith.constant 0 : index
    %c243 = arith.constant 243 : index
    %c0_43 = arith.constant 0 : index
    %35 = vector.load %arg1[%c0_42, %c243, %c0_43] : memref<1x333x3xbf16, #tpu.memory_space<vmem>>, vector<1x72x3xbf16>
    %36 = vector.shape_cast %35 : vector<1x72x3xbf16> to vector<72x3xbf16>
    %c4 = arith.constant 4 : index
    %c0_44 = arith.constant 0 : index
    %c0_45 = arith.constant 0 : index
    %37 = vector.load %arg2[%c4, %c0_44, %c0_45] : memref<9x3x40xbf16, #tpu.memory_space<vmem>>, vector<1x3x40xbf16>
    %38 = vector.shape_cast %37 : vector<1x3x40xbf16> to vector<3x40xbf16>
    %cst_46 = arith.constant dense<0.000000e+00> : vector<72x40xf32>
    %39 = tpu.matmul %36, %38, %cst_46 {dimension_numbers = #tpu.dot_dimension_numbers<[1], [0], [0], [1], [0, 0, 1, 1], [], []>} : vector<72x3xbf16>, vector<3x40xbf16>, vector<72x40xf32> -> vector<72x40xf32>
    %40 = arith.addf %34, %39 : vector<72x40xf32>
    %c0_47 = arith.constant 0 : index
    %c0_48 = arith.constant 0 : index
    %41 = vector.load %arg5[%c0_47, %c0_48] : memref<72x40xf32, #tpu.memory_space<vmem>>, vector<72x40xf32>
    tpu.vector_store %arg5[%c0_47, %c0_48], %40 {strides = array<i32>} : memref<72x40xf32, #tpu.memory_space<vmem>>, vector<72x40xf32>,
    %c0_49 = arith.constant 0 : index
    %c0_50 = arith.constant 0 : index
    %42 = vector.load %arg5[%c0_49, %c0_50] : memref<72x40xf32, #tpu.memory_space<vmem>>, vector<72x40xf32>
    %c0_51 = arith.constant 0 : index
    %c163 = arith.constant 163 : index
    %c0_52 = arith.constant 0 : index
    %43 = vector.load %arg1[%c0_51, %c163, %c0_52] : memref<1x333x3xbf16, #tpu.memory_space<vmem>>, vector<1x72x3xbf16>
    %44 = vector.shape_cast %43 : vector<1x72x3xbf16> to vector<72x3xbf16>
    %c5 = arith.constant 5 : index
    %c0_53 = arith.constant 0 : index
    %c0_54 = arith.constant 0 : index
    %45 = vector.load %arg2[%c5, %c0_53, %c0_54] : memref<9x3x40xbf16, #tpu.memory_space<vmem>>, vector<1x3x40xbf16>
    %46 = vector.shape_cast %45 : vector<1x3x40xbf16> to vector<3x40xbf16>
    %cst_55 = arith.constant dense<0.000000e+00> : vector<72x40xf32>
    %47 = tpu.matmul %44, %46, %cst_55 {dimension_numbers = #tpu.dot_dimension_numbers<[1], [0], [0], [1], [0, 0, 1, 1], [], []>} : vector<72x3xbf16>, vector<3x40xbf16>, vector<72x40xf32> -> vector<72x40xf32>
    %48 = arith.addf %42, %47 : vector<72x40xf32>
    %c0_56 = arith.constant 0 : index
    %c0_57 = arith.constant 0 : index
    %49 = vector.load %arg5[%c0_56, %c0_57] : memref<72x40xf32, #tpu.memory_space<vmem>>, vector<72x40xf32>
    tpu.vector_store %arg5[%c0_56, %c0_57], %48 {strides = array<i32>} : memref<72x40xf32, #tpu.memory_space<vmem>>, vector<72x40xf32>,
    %c0_58 = arith.constant 0 : index
    %c0_59 = arith.constant 0 : index
    %50 = vector.load %arg5[%c0_58, %c0_59] : memref<72x40xf32, #tpu.memory_space<vmem>>, vector<72x40xf32>
    %c0_60 = arith.constant 0 : index
    %c9 = arith.constant 9 : index
    %c0_61 = arith.constant 0 : index
    %51 = vector.load %arg1[%c0_60, %c9, %c0_61] : memref<1x333x3xbf16, #tpu.memory_space<vmem>>, vector<1x72x3xbf16>
    %52 = vector.shape_cast %51 : vector<1x72x3xbf16> to vector<72x3xbf16>
    %c6 = arith.constant 6 : index
    %c0_62 = arith.constant 0 : index
    %c0_63 = arith.constant 0 : index
    %53 = vector.load %arg2[%c6, %c0_62, %c0_63] : memref<9x3x40xbf16, #tpu.memory_space<vmem>>, vector<1x3x40xbf16>
    %54 = vector.shape_cast %53 : vector<1x3x40xbf16> to vector<3x40xbf16>
    %cst_64 = arith.constant dense<0.000000e+00> : vector<72x40xf32>
    %55 = tpu.matmul %52, %54, %cst_64 {dimension_numbers = #tpu.dot_dimension_numbers<[1], [0], [0], [1], [0, 0, 1, 1], [], []>} : vector<72x3xbf16>, vector<3x40xbf16>, vector<72x40xf32> -> vector<72x40xf32>
    %56 = arith.addf %50, %55 : vector<72x40xf32>
    %c0_65 = arith.constant 0 : index
    %c0_66 = arith.constant 0 : index
    %57 = vector.load %arg5[%c0_65, %c0_66] : memref<72x40xf32, #tpu.memory_space<vmem>>, vector<72x40xf32>
    tpu.vector_store %arg5[%c0_65, %c0_66], %56 {strides = array<i32>} : memref<72x40xf32, #tpu.memory_space<vmem>>, vector<72x40xf32>,
    %c0_67 = arith.constant 0 : index
    %c0_68 = arith.constant 0 : index
    %58 = vector.load %arg5[%c0_67, %c0_68] : memref<72x40xf32, #tpu.memory_space<vmem>>, vector<72x40xf32>
    %c0_69 = arith.constant 0 : index
    %c90 = arith.constant 90 : index
    %c0_70 = arith.constant 0 : index
    %59 = vector.load %arg1[%c0_69, %c90, %c0_70] : memref<1x333x3xbf16, #tpu.memory_space<vmem>>, vector<1x72x3xbf16>
    %60 = vector.shape_cast %59 : vector<1x72x3xbf16> to vector<72x3xbf16>
    %c7 = arith.constant 7 : index
    %c0_71 = arith.constant 0 : index
    %c0_72 = arith.constant 0 : index
    %61 = vector.load %arg2[%c7, %c0_71, %c0_72] : memref<9x3x40xbf16, #tpu.memory_space<vmem>>, vector<1x3x40xbf16>
    %62 = vector.shape_cast %61 : vector<1x3x40xbf16> to vector<3x40xbf16>
    %cst_73 = arith.constant dense<0.000000e+00> : vector<72x40xf32>
    %63 = tpu.matmul %60, %62, %cst_73 {dimension_numbers = #tpu.dot_dimension_numbers<[1], [0], [0], [1], [0, 0, 1, 1], [], []>} : vector<72x3xbf16>, vector<3x40xbf16>, vector<72x40xf32> -> vector<72x40xf32>
    %64 = arith.addf %58, %63 : vector<72x40xf32>
    %c0_74 = arith.constant 0 : index
    %c0_75 = arith.constant 0 : index
    %65 = vector.load %arg5[%c0_74, %c0_75] : memref<72x40xf32, #tpu.memory_space<vmem>>, vector<72x40xf32>
    tpu.vector_store %arg5[%c0_74, %c0_75], %64 {strides = array<i32>} : memref<72x40xf32, #tpu.memory_space<vmem>>, vector<72x40xf32>,
    %c0_76 = arith.constant 0 : index
    %c0_77 = arith.constant 0 : index
    %66 = vector.load %arg5[%c0_76, %c0_77] : memref<72x40xf32, #tpu.memory_space<vmem>>, vector<72x40xf32>
    %c0_78 = arith.constant 0 : index
    %c10 = arith.constant 10 : index
    %c0_79 = arith.constant 0 : index
    %67 = vector.load %arg1[%c0_78, %c10, %c0_79] : memref<1x333x3xbf16, #tpu.memory_space<vmem>>, vector<1x72x3xbf16>
    %68 = vector.shape_cast %67 : vector<1x72x3xbf16> to vector<72x3xbf16>
    %c8 = arith.constant 8 : index
    %c0_80 = arith.constant 0 : index
    %c0_81 = arith.constant 0 : index
    %69 = vector.load %arg2[%c8, %c0_80, %c0_81] : memref<9x3x40xbf16, #tpu.memory_space<vmem>>, vector<1x3x40xbf16>
    %70 = vector.shape_cast %69 : vector<1x3x40xbf16> to vector<3x40xbf16>
    %cst_82 = arith.constant dense<0.000000e+00> : vector<72x40xf32>
    %71 = tpu.matmul %68, %70, %cst_82 {dimension_numbers = #tpu.dot_dimension_numbers<[1], [0], [0], [1], [0, 0, 1, 1], [], []>} : vector<72x3xbf16>, vector<3x40xbf16>, vector<72x40xf32> -> vector<72x40xf32>
    %72 = arith.addf %66, %71 : vector<72x40xf32>
    %c0_83 = arith.constant 0 : index
    %c0_84 = arith.constant 0 : index
    %73 = vector.load %arg5[%c0_83, %c0_84] : memref<72x40xf32, #tpu.memory_space<vmem>>, vector<72x40xf32>
    tpu.vector_store %arg5[%c0_83, %c0_84], %72 {strides = array<i32>} : memref<72x40xf32, #tpu.memory_space<vmem>>, vector<72x40xf32>,
    %c0_85 = arith.constant 0 : index
    %c0_86 = arith.constant 0 : index
    %74 = vector.load %arg5[%c0_85, %c0_86] : memref<72x40xf32, #tpu.memory_space<vmem>>, vector<72x40xf32>
    %c0_87 = arith.constant 0 : index
    %c0_88 = arith.constant 0 : index
    %75 = vector.load %arg3[%c0_87, %c0_88] : memref<1x40xf32, #tpu.memory_space<vmem>>, vector<1x40xf32>
    %76 = vector.broadcast %75 : vector<1x40xf32> to vector<72x40xf32>
    %77 = arith.addf %74, %76 : vector<72x40xf32>
    %cst_89 = arith.constant 0.000000e+00 : f32
    %78 = vector.broadcast %cst_89 : f32 to vector<72x40xf32>
    %79 = arith.maximumf %77, %78 : vector<72x40xf32>
    %80 = arith.truncf %79 : vector<72x40xf32> to vector<72x40xbf16>
    %81 = vector.extract_strided_slice %80 {offsets = [0, 0], sizes = [8, 40], strides = [1, 1]} : vector<72x40xbf16> to vector<8x40xbf16>
    %c0_90 = arith.constant 0 : index
    %c0_91 = arith.constant 0 : index
    %c0_92 = arith.constant 0 : index
    %82 = vector.load %arg4[%c0_90, %c0_91, %c0_92] : memref<1x64x40xbf16, #tpu.memory_space<vmem>>, vector<1x8x40xbf16>
    %83 = vector.shape_cast %82 : vector<1x8x40xbf16> to vector<8x40xbf16>
    %84 = vector.shape_cast %81 : vector<8x40xbf16> to vector<1x8x40xbf16>
    tpu.vector_store %arg4[%c0_90, %c0_91, %c0_92], %84 {strides = array<i32>} : memref<1x64x40xbf16, #tpu.memory_space<vmem>>, vector<1x8x40xbf16>,
    %85 = vector.extract_strided_slice %80 {offsets = [9, 0], sizes = [8, 40], strides = [1, 1]} : vector<72x40xbf16> to vector<8x40xbf16>
    %c0_93 = arith.constant 0 : index
    %c8_94 = arith.constant 8 : index
    %c0_95 = arith.constant 0 : index
    %86 = vector.load %arg4[%c0_93, %c8_94, %c0_95] : memref<1x64x40xbf16, #tpu.memory_space<vmem>>, vector<1x8x40xbf16>
    %87 = vector.shape_cast %86 : vector<1x8x40xbf16> to vector<8x40xbf16>
    %88 = vector.shape_cast %85 : vector<8x40xbf16> to vector<1x8x40xbf16>
    tpu.vector_store %arg4[%c0_93, %c8_94, %c0_95], %88 {strides = array<i32>} : memref<1x64x40xbf16, #tpu.memory_space<vmem>>, vector<1x8x40xbf16>,
    %89 = vector.extract_strided_slice %80 {offsets = [18, 0], sizes = [8, 40], strides = [1, 1]} : vector<72x40xbf16> to vector<8x40xbf16>
    %c0_96 = arith.constant 0 : index
    %c16 = arith.constant 16 : index
    %c0_97 = arith.constant 0 : index
    %90 = vector.load %arg4[%c0_96, %c16, %c0_97] : memref<1x64x40xbf16, #tpu.memory_space<vmem>>, vector<1x8x40xbf16>
    %91 = vector.shape_cast %90 : vector<1x8x40xbf16> to vector<8x40xbf16>
    %92 = vector.shape_cast %89 : vector<8x40xbf16> to vector<1x8x40xbf16>
    tpu.vector_store %arg4[%c0_96, %c16, %c0_97], %92 {strides = array<i32>} : memref<1x64x40xbf16, #tpu.memory_space<vmem>>, vector<1x8x40xbf16>,
    %93 = vector.extract_strided_slice %80 {offsets = [27, 0], sizes = [8, 40], strides = [1, 1]} : vector<72x40xbf16> to vector<8x40xbf16>
    %c0_98 = arith.constant 0 : index
    %c24 = arith.constant 24 : index
    %c0_99 = arith.constant 0 : index
    %94 = vector.load %arg4[%c0_98, %c24, %c0_99] : memref<1x64x40xbf16, #tpu.memory_space<vmem>>, vector<1x8x40xbf16>
    %95 = vector.shape_cast %94 : vector<1x8x40xbf16> to vector<8x40xbf16>
    %96 = vector.shape_cast %93 : vector<8x40xbf16> to vector<1x8x40xbf16>
    tpu.vector_store %arg4[%c0_98, %c24, %c0_99], %96 {strides = array<i32>} : memref<1x64x40xbf16, #tpu.memory_space<vmem>>, vector<1x8x40xbf16>,
    %97 = vector.extract_strided_slice %80 {offsets = [36, 0], sizes = [8, 40], strides = [1, 1]} : vector<72x40xbf16> to vector<8x40xbf16>
    %c0_100 = arith.constant 0 : index
    %c32 = arith.constant 32 : index
    %c0_101 = arith.constant 0 : index
    %98 = vector.load %arg4[%c0_100, %c32, %c0_101] : memref<1x64x40xbf16, #tpu.memory_space<vmem>>, vector<1x8x40xbf16>
    %99 = vector.shape_cast %98 : vector<1x8x40xbf16> to vector<8x40xbf16>
    %100 = vector.shape_cast %97 : vector<8x40xbf16> to vector<1x8x40xbf16>
    tpu.vector_store %arg4[%c0_100, %c32, %c0_101], %100 {strides = array<i32>} : memref<1x64x40xbf16, #tpu.memory_space<vmem>>, vector<1x8x40xbf16>,
    %101 = vector.extract_strided_slice %80 {offsets = [45, 0], sizes = [8, 40], strides = [1, 1]} : vector<72x40xbf16> to vector<8x40xbf16>
    %c0_102 = arith.constant 0 : index
    %c40 = arith.constant 40 : index
    %c0_103 = arith.constant 0 : index
    %102 = vector.load %arg4[%c0_102, %c40, %c0_103] : memref<1x64x40xbf16, #tpu.memory_space<vmem>>, vector<1x8x40xbf16>
    %103 = vector.shape_cast %102 : vector<1x8x40xbf16> to vector<8x40xbf16>
    %104 = vector.shape_cast %101 : vector<8x40xbf16> to vector<1x8x40xbf16>
    tpu.vector_store %arg4[%c0_102, %c40, %c0_103], %104 {strides = array<i32>} : memref<1x64x40xbf16, #tpu.memory_space<vmem>>, vector<1x8x40xbf16>,
    %105 = vector.extract_strided_slice %80 {offsets = [54, 0], sizes = [8, 40], strides = [1, 1]} : vector<72x40xbf16> to vector<8x40xbf16>
    %c0_104 = arith.constant 0 : index
    %c48 = arith.constant 48 : index
    %c0_105 = arith.constant 0 : index
    %106 = vector.load %arg4[%c0_104, %c48, %c0_105] : memref<1x64x40xbf16, #tpu.memory_space<vmem>>, vector<1x8x40xbf16>
    %107 = vector.shape_cast %106 : vector<1x8x40xbf16> to vector<8x40xbf16>
    %108 = vector.shape_cast %105 : vector<8x40xbf16> to vector<1x8x40xbf16>
    tpu.vector_store %arg4[%c0_104, %c48, %c0_105], %108 {strides = array<i32>} : memref<1x64x40xbf16, #tpu.memory_space<vmem>>, vector<1x8x40xbf16>,
    %109 = vector.extract_strided_slice %80 {offsets = [63, 0], sizes = [8, 40], strides = [1, 1]} : vector<72x40xbf16> to vector<8x40xbf16>
    %c0_106 = arith.constant 0 : index
    %c56 = arith.constant 56 : index
    %c0_107 = arith.constant 0 : index
    %110 = vector.load %arg4[%c0_106, %c56, %c0_107] : memref<1x64x40xbf16, #tpu.memory_space<vmem>>, vector<1x8x40xbf16>
    %111 = vector.shape_cast %110 : vector<1x8x40xbf16> to vector<8x40xbf16>
    %112 = vector.shape_cast %109 : vector<8x40xbf16> to vector<1x8x40xbf16>
    tpu.vector_store %arg4[%c0_106, %c56, %c0_107], %112 {strides = array<i32>} : memref<1x64x40xbf16, #tpu.memory_space<vmem>>, vector<1x8x40xbf16>,
    return
  }
  func.func @transform_0(%arg0: i32) -> (i32, i32, i32) {
    %c0_i32 = arith.constant 0 : i32
    %c0_i32_0 = arith.constant 0 : i32
    %c0_i32_1 = arith.constant 0 : i32
    return %arg0, %c0_i32, %c0_i32_0 : i32, i32, i32
  }
  func.func @transform_1(%arg0: i32) -> (i32, i32, i32) {
    %c0_i32 = arith.constant 0 : i32
    %c0_i32_0 = arith.constant 0 : i32
    %c0_i32_1 = arith.constant 0 : i32
    %c0_i32_2 = arith.constant 0 : i32
    return %c0_i32, %c0_i32_0, %c0_i32_1 : i32, i32, i32
  }
  func.func @transform_2(%arg0: i32) -> (i32, i32) {
    %c0_i32 = arith.constant 0 : i32
    %c0_i32_0 = arith.constant 0 : i32
    %c0_i32_1 = arith.constant 0 : i32
    return %c0_i32, %c0_i32_0 : i32, i32
  }
  func.func @transform_3(%arg0: i32) -> (i32, i32, i32) {
    %c0_i32 = arith.constant 0 : i32
    %c0_i32_0 = arith.constant 0 : i32
    %c0_i32_1 = arith.constant 0 : i32
    return %arg0, %c0_i32, %c0_i32_0 : i32, i32, i32
  }
}

</mosaic_0001>

<llo_original>
// kernel: tpu_custom_call.1
$region0: #{tpu_custom_call.1}
  #allocation0 [shape = 'u32[]', space=smem, size = 0x4, offset = 0x4, fixed_abs, tag = 'smem constant byte address 0x4 - core index']
  #allocation1 [shape = 'u32[144,128]{1,0:T(1,128)}', space=vmem, size = 0x12000, scoped, tag = 'internal scratch']
  #allocation2 [shape = 'f32[72,40]{1,0:T(8,128)}', space=vmem, size = 0x9000, scoped, tag = 'scratch operand']
  %s0 = inlined_call_operand.vmem [shape: bf16[2,333,3], index: 0, kind: input, shape index: {}]
  %s1 = inlined_call_operand.vmem [shape: bf16[9,3,40], index: 1, kind: input, shape index: {}]
  %s2 = inlined_call_operand.vmem [shape: f32[1,40], index: 2, kind: input, shape index: {}]
  %s3 = inlined_call_operand.vmem [shape: bf16[2,64,40], index: 3, kind: output, shape index: {}]
  %s4 = sld [smem:[#allocation0]]
  $region45: #{tpu_custom_call.1} parent=0
    _
  %s6 = ssub.s32 1, %s4
  %s7 = scalar_select 0, %s6, %s4
  loop: start=0, step=1, limit=4
  $region2: #{tpu_custom_call.1} parent=0 // loop_pre_header
    _
  $region3: #{tpu_custom_call.1} parent=0 // loop_header
    %s9 = sphi 0, %s13
    %p10 = scmp.ge.s32.totalorder %s9, 4
    %s19 = sphi 0, %s21
    %s22 = sphi 0, %s19
    %s23 = sphi 0, %s22
    %s39 = sphi 0, %s23
    %s43 = sphi 0, %s43
    %s45 = sphi 0, %s43
    %s46 = sphi 0, %s45
    %s60 = sphi 0, %s46
    %s64 = sphi 0, %s64
    %s66 = sphi 0, %s64
    %s67 = sphi 0, %s66
    %s81 = sphi 0, %s67
    %s87 = sphi 0, %s89
    %s90 = sphi 0, %s87
    %s91 = sphi 0, %s90
    %s107 = sphi 0, %s91
  $region4: #{tpu_custom_call.1} parent=0 // loop_header_branch
    %12 = sbr.rel (%p10) target = $region8
  $region5: #{tpu_custom_call.1} parent=0 // loop_body
    %s14 = ssub.s32 %s9, 1
    %s15 = ssub.s32 %s9, 2
    %s16 = sadd.s32 %s9, 1
    %s17 = ssub.s32 %s9, %s16
    %p18 = scmp.eq.s32.totalorder %s17, 0
    %s20 = sadd.s32 %s19, 1
    %s21 = scalar_select %p18, %s19, %s20
    %p24 = pneg %p18
    %p25 = scmp.eq.s32.totalorder %s9, 1
    %p26 = por %p24, %p25
    %p27 = scmp.ne.s32.totalorder %s19, %s22
    %p28 = scmp.eq.s32.totalorder %s9, 0
    %p29 = por %p27, %p28
    %p30 = scmp.ne.s32.totalorder %s19, %s22
    %p31 = scmp.eq.s32.totalorder %s14, 1
    %p32 = por %p30, %p31
    %p33 = scmp.ne.s32.totalorder %s22, %s23
    %p34 = scmp.eq.s32.totalorder %s14, 0
    %p35 = por %p33, %p34
    %p36 = scmp.ne.s32.totalorder %s22, %s23
    %p37 = scmp.eq.s32.totalorder %s15, 1
    %p38 = por %p36, %p37
    %p40 = scmp.ne.s32.totalorder %s23, %s39
    %p41 = scmp.eq.s32.totalorder %s15, 0
    %p42 = por %p40, %p41
    %s44 = sadd.s32 %s43, 1
    %p47 = scmp.eq.s32.totalorder %s9, 1
    %p48 = scmp.ne.s32.totalorder %s43, %s45
    %p49 = scmp.eq.s32.totalorder %s9, 0
    %p50 = por %p48, %p49
    %p51 = scmp.ne.s32.totalorder %s43, %s45
    %p52 = scmp.eq.s32.totalorder %s14, 1
    %p53 = por %p51, %p52
    %p54 = scmp.ne.s32.totalorder %s45, %s46
    %p55 = scmp.eq.s32.totalorder %s14, 0
    %p56 = por %p54, %p55
    %p57 = scmp.ne.s32.totalorder %s45, %s46
    %p58 = scmp.eq.s32.totalorder %s15, 1
    %p59 = por %p57, %p58
    %p61 = scmp.ne.s32.totalorder %s46, %s60
    %p62 = scmp.eq.s32.totalorder %s15, 0
    %p63 = por %p61, %p62
    %s65 = sadd.s32 %s64, 1
    %p68 = scmp.eq.s32.totalorder %s9, 1
    %p69 = scmp.ne.s32.totalorder %s64, %s66
    %p70 = scmp.eq.s32.totalorder %s9, 0
    %p71 = por %p69, %p70
    %p72 = scmp.ne.s32.totalorder %s64, %s66
    %p73 = scmp.eq.s32.totalorder %s14, 1
    %p74 = por %p72, %p73
    %p75 = scmp.ne.s32.totalorder %s66, %s67
    %p76 = scmp.eq.s32.totalorder %s14, 0
    %p77 = por %p75, %p76
    %p78 = scmp.ne.s32.totalorder %s66, %s67
    %p79 = scmp.eq.s32.totalorder %s15, 1
    %p80 = por %p78, %p79
    %p82 = scmp.ne.s32.totalorder %s67, %s81
    %p83 = scmp.eq.s32.totalorder %s15, 0
    %p84 = por %p82, %p83
    %s85 = ssub.s32 %s9, %s16
    %p86 = scmp.eq.s32.totalorder %s85, 0
    %s88 = sadd.s32 %s87, 1
    %s89 = scalar_select %p86, %s87, %s88
    %p92 = pneg %p86
    %p93 = scmp.eq.s32.totalorder %s9, 1
    %p94 = por %p92, %p93
    %p95 = scmp.ne.s32.totalorder %s87, %s90
    %p96 = scmp.eq.s32.totalorder %s9, 0
    %p97 = por %p95, %p96
    %p98 = scmp.ne.s32.totalorder %s87, %s90
    %p99 = scmp.eq.s32.totalorder %s14, 1
    %p100 = por %p98, %p99
    %p101 = scmp.ne.s32.totalorder %s90, %s91
    %p102 = scmp.eq.s32.totalorder %s14, 0
    %p103 = por %p101, %p102
    %p104 = scmp.ne.s32.totalorder %s90, %s91
    %p105 = scmp.eq.s32.totalorder %s15, 1
    %p106 = por %p104, %p105
    %p108 = scmp.ne.s32.totalorder %s91, %s107
    %p109 = scmp.eq.s32.totalorder %s15, 0
    %p110 = por %p108, %p109
    %p111 = scmp.le.s32.totalorder 1, %s9
    %p112 = scmp.lt.s32.totalorder %s9, 3
    %p113 = pnand %p111, %p112
    %p114 = pneg %p113
    // Predicated region
    $region9: #{tpu_custom_call.1} parent=5 // pred_check
      _
    $region10: #{tpu_custom_call.1} parent=5 // pred_check_branch
      %116 = sbr.rel (%p113) target = $region12
    $region11: #{tpu_custom_call.1} parent=5 // pred_region
      %s117 = ssub.s32 %s9, 1
      // Predicated region
      $region13: #{tpu_custom_call.1} parent=11 // pred_check
        %p118 = pneg %p56
      $region14: #{tpu_custom_call.1} parent=11 // pred_check_branch
        %120 = sbr.rel (%p118) target = $region16
      $region15: #{tpu_custom_call.1} parent=11 // pred_region
        _
      $region16: #{tpu_custom_call.1} parent=11 // pred_fallthru
        _
      // Predicated region
      $region17: #{tpu_custom_call.1} parent=11 // pred_check
        %p121 = pneg %p77
      $region18: #{tpu_custom_call.1} parent=11 // pred_check_branch
        %123 = sbr.rel (%p121) target = $region20
      $region19: #{tpu_custom_call.1} parent=11 // pred_region
        _
      $region20: #{tpu_custom_call.1} parent=11 // pred_fallthru
        _
    $region12: #{tpu_custom_call.1} parent=5 // pred_fallthru
      _
    %p124 = scmp.lt.s32.totalorder %s9, 2
    // Predicated region
    $region21: #{tpu_custom_call.1} parent=5 // pred_check
      %p125 = pneg %p124
    $region22: #{tpu_custom_call.1} parent=5 // pred_check_branch
      %127 = sbr.rel (%p125) target = $region24
    $region23: #{tpu_custom_call.1} parent=5 // pred_region
      // Predicated region
      $region25: #{tpu_custom_call.1} parent=23 // pred_check
        %p128 = pneg %p29
      $region26: #{tpu_custom_call.1} parent=23 // pred_check_branch
        %130 = sbr.rel (%p128) target = $region28
      $region27: #{tpu_custom_call.1} parent=23 // pred_region
        %p131 = scmp.lt.s32.totalorder %s9, 1
        %s132 = scalar_select %p131, %s9, 1
        %s133 = smul.addr %s132, 42
        %s134 = smul.addr %s133, 4
        %s135 = scalar_lea.vmem %s0, %s134
      $region28: #{tpu_custom_call.1} parent=23 // pred_fallthru
        _
    $region24: #{tpu_custom_call.1} parent=5 // pred_fallthru
      _
    %p136 = scmp.le.s32.totalorder 1, %s9
    %p137 = scmp.lt.s32.totalorder %s9, 3
    %p138 = pnand %p136, %p137
    %p139 = pneg %p138
    // Predicated region
    $region29: #{tpu_custom_call.1} parent=5 // pred_check
      _
    $region30: #{tpu_custom_call.1} parent=5 // pred_check_branch
      %141 = sbr.rel (%p138) target = $region32
    $region31: #{tpu_custom_call.1} parent=5 // pred_region
      %s142 = ssub.s32 %s9, 1
      %p143 = scmp.lt.s32.totalorder %s14, 1
      %s144 = scalar_select %p143, %s14, 1
      %s145 = smul.addr %s144, 42
      %s146 = smul.addr %s145, 4
      %s147 = scalar_lea.vmem %s0, %s146
      %p148 = pneg %p35
      %p149 = pneg %p32
      %p150 = pneg %p56
      %p151 = pneg %p53
      %p152 = pneg %p77
      %p153 = pneg %p74
      %p154 = pneg %p103
      %p155 = pneg %p100
      %p156 = scmp.lt.s32.totalorder %s14, 1
      %s157 = scalar_select %p156, %s14, 1
      %s158 = smul.addr %s157, 8
      %s159 = smul.addr %s158, 4
      %s160 = scalar_lea.vmem %s3, %s159
      %p161 = scmp.lt.s32.totalorder %s14, 1
      %s162 = scalar_select %p161, %s14, 1
      %s163 = smul.addr %s162, 42
      %s164 = smul.addr %s163, 4
      %s165 = scalar_lea.vmem %s0, %s164
      %p166 = scmp.lt.s32.totalorder %s14, 1
      %s167 = scalar_select %p166, %s14, 1
      %s168 = smul.addr %s167, 8
      %s169 = smul.addr %s168, 4
      %s170 = scalar_lea.vmem %s3, %s169
      %vm172 = vcmask 326656
      %173 = vst.msk [vmem:[#allocation2] sm:$0xff] %vm172, 0.0
      %174 = vst.msk [vmem:[#allocation2 + $0x8] sm:$0xff] %vm172, 0.0
      %175 = vst.msk [vmem:[#allocation2 + $0x10] sm:$0xff] %vm172, 0.0
      %176 = vst.msk [vmem:[#allocation2 + $0x18] sm:$0xff] %vm172, 0.0
      %177 = vst.msk [vmem:[#allocation2 + $0x20] sm:$0xff] %vm172, 0.0
      %178 = vst.msk [vmem:[#allocation2 + $0x28] sm:$0xff] %vm172, 0.0
      %179 = vst.msk [vmem:[#allocation2 + $0x30] sm:$0xff] %vm172, 0.0
      %180 = vst.msk [vmem:[#allocation2 + $0x38] sm:$0xff] %vm172, 0.0
      %181 = vst.msk [vmem:[#allocation2 + $0x40] sm:$0xff] %vm172, 0.0
      %v182 = vld [vmem:[#allocation2] sm:$0xff]
      %v183 = vld [vmem:[#allocation2 + $0x8] sm:$0xff]
      %v184 = vld [vmem:[#allocation2 + $0x10] sm:$0xff]
      %v185 = vld [vmem:[#allocation2 + $0x18] sm:$0xff]
      %v186 = vld [vmem:[#allocation2 + $0x20] sm:$0xff]
      %v187 = vld [vmem:[#allocation2 + $0x28] sm:$0xff]
      %v188 = vld [vmem:[#allocation2 + $0x30] sm:$0xff]
      %v189 = vld [vmem:[#allocation2 + $0x38] sm:$0xff]
      %v190 = vld [vmem:[#allocation2 + $0x40] sm:$0xff]
      %v191 = vld [vmem:[%s165] sm:$0xf]
      %v192 = vld [vmem:[%s165 + $0x4] sm:$0xf]
      %v193 = vld [vmem:[%s165 + $0x8] sm:$0xf]
      %v194 = vld [vmem:[%s165 + $0xc] sm:$0xf]
      %v195 = vld [vmem:[%s165 + $0x10] sm:$0xf]
      %v196 = vld [vmem:[%s165 + $0x14] sm:$0xf]
      %v197 = vld [vmem:[%s165 + $0x18] sm:$0xf]
      %v198 = vld [vmem:[%s165 + $0x1c] sm:$0xf]
      %v199 = vld [vmem:[%s165 + $0x20] sm:$0xf]
      %v200 = vld [vmem:[%s1] sm:$0x3]
      %v210 = vunpack.c.l.b16 %v191
      %v211 = vunpack.c.l.b16 %v192
      %v212 = vunpack.c.l.b16 %v193
      %v213 = vunpack.c.l.b16 %v194
      %v214 = vunpack.c.l.b16 %v195
      %v215 = vunpack.c.l.b16 %v196
      %v216 = vunpack.c.l.b16 %v197
      %v217 = vunpack.c.l.b16 %v198
      %v218 = vunpack.c.l.b16 %v199
      %v219 = vpack.c.b16 %v211, %v210
      %v220 = vpack.c.b16 %v213, %v212
      %v221 = vpack.c.b16 %v215, %v214
      %v222 = vpack.c.b16 %v217, %v216
      %v223 = vpack.c.b16 %v218, %v218
      %vm224 = vcmask 23552
      %v226 = vsel %vm224, %v219, 0
      %v229 = vsel %vm224, %v220, 0
      %v232 = vsel %vm224, %v221, 0
      %v235 = vsel %vm224, %v222, 0
      %v238 = vsel %vm224, %v223, 0
      %vm240 = vcmask 1040384
      %vm241 = vcmask 1041408
      %v242 = vsel %vm240, 4294967295, 65535
      %v243 = vsel %vm241, %v242, 0
      %v245 = vand.u32 %v200, %v243
      %247 = vmatprep.subr.bf16.mxu0 0
      %248 = vmatpush1.bf16.msra.mxu0 %v245
      %249 = vmatprep.subr.bf16.mxu0 0
      %250 = vmatpush1.bf16.msra.mxu0 0
      %251 = vmatprep.subr.bf16.mxu0 0
      %252 = vmatpush1.bf16.msra.mxu0 0
      %253 = vmatprep.subr.bf16.mxu0 0
      %254 = vmatpush1.bf16.msra.mxu0 0
      %255 = vmatprep.subr.bf16.mxu0 0
      %256 = vmatpush1.bf16.msra.mxu0 0
      %257 = vmatprep.subr.bf16.mxu0 0
      %258 = vmatpush1.bf16.msra.mxu0 0
      %259 = vmatprep.subr.bf16.mxu0 0
      %260 = vmatpush1.bf16.msra.mxu0 0
      %261 = vmatprep.subr.bf16.mxu0 0
      %262 = vmatpush1.bf16.msra.mxu0 0
      %263 = vmatprep.subr.bf16.mxu0 0
      %264 = vmatpush1.bf16.msra.mxu0 0
      %265 = vmatprep.subr.bf16.mxu0 0
      %266 = vmatpush1.bf16.msra.mxu0 0
      %267 = vmatprep.subr.bf16.mxu0 0
      %268 = vmatpush1.bf16.msra.mxu0 0
      %269 = vmatprep.subr.bf16.mxu0 0
      %270 = vmatpush1.bf16.msra.mxu0 0
      %271 = vmatprep.subr.bf16.mxu0 0
      %272 = vmatpush1.bf16.msra.mxu0 0
      %273 = vmatprep.subr.bf16.mxu0 0
      %274 = vmatpush1.bf16.msra.mxu0 0
      %275 = vmatprep.subr.bf16.mxu0 0
      %276 = vmatpush1.bf16.msra.mxu0 0
      %277 = vmatprep.subr.bf16.mxu0 0
      %278 = vmatpush1.bf16.msra.mxu0 0
      %279 = vmatprep.mubr.bf16.mxu0 0
      %280 = vmatmul.mubr.bf16.gmra.mrb[0].mxu0 %v226
      %v281 = vpop.f32.mrb[0].mxu0
      %v282 = vadd.f32 0.0, %v281
      %v283 = vpop.f32.mrb[0].mxu0
      %v284 = vpop.f32.mrb[0].mxu0
      %v285 = vadd.f32 0.0, %v284
      %v286 = vpop.f32.mrb[0].mxu0
      %287 = vmatprep.mubr.bf16.mxu0 0
      %288 = vmatmul.mubr.bf16.gmra.mrb[0].mxu0 %v229
      %v289 = vpop.f32.mrb[0].mxu0
      %v290 = vadd.f32 0.0, %v289
      %v291 = vpop.f32.mrb[0].mxu0
      %v292 = vpop.f32.mrb[0].mxu0
      %v293 = vadd.f32 0.0, %v292
      %v294 = vpop.f32.mrb[0].mxu0
      %295 = vmatprep.mubr.bf16.mxu0 0
      %296 = vmatmul.mubr.bf16.gmra.mrb[0].mxu0 %v232
      %v297 = vpop.f32.mrb[0].mxu0
      %v298 = vadd.f32 0.0, %v297
      %v299 = vpop.f32.mrb[0].mxu0
      %v300 = vpop.f32.mrb[0].mxu0
      %v301 = vadd.f32 0.0, %v300
      %v302 = vpop.f32.mrb[0].mxu0
      %303 = vmatprep.mubr.bf16.mxu0 0
      %304 = vmatmul.mubr.bf16.gmra.mrb[0].mxu0 %v235
      %v305 = vpop.f32.mrb[0].mxu0
      %v306 = vadd.f32 0.0, %v305
      %v307 = vpop.f32.mrb[0].mxu0
      %v308 = vpop.f32.mrb[0].mxu0
      %v309 = vadd.f32 0.0, %v308
      %v310 = vpop.f32.mrb[0].mxu0
      %311 = vmatprep.mubr.bf16.mxu0 0
      %312 = vmatmul.mubr.bf16.gmra.mrb[0].mxu0 %v238
      %v313 = vpop.f32.mrb[0].mxu0
      %v314 = vadd.f32 0.0, %v313
      %v315 = vpop.f32.mrb[0].mxu0
      %v316 = vpop.f32.mrb[0].mxu0
      %v317 = vpop.f32.mrb[0].mxu0
      %318 = vdwg.mxu0
      %v319 = vadd.f32 %v182, %v282
      %v320 = vadd.f32 %v183, %v285
      %v321 = vadd.f32 %v184, %v290
      %v322 = vadd.f32 %v185, %v293
      %v323 = vadd.f32 %v186, %v298
      %v324 = vadd.f32 %v187, %v301
      %v325 = vadd.f32 %v188, %v306
      %v326 = vadd.f32 %v189, %v309
      %v327 = vadd.f32 %v190, %v314
      %328 = vst.msk [vmem:[#allocation2] sm:$0xff] %vm172, %v319
      %329 = vst.msk [vmem:[#allocation2 + $0x8] sm:$0xff] %vm172, %v320
      %330 = vst.msk [vmem:[#allocation2 + $0x10] sm:$0xff] %vm172, %v321
      %331 = vst.msk [vmem:[#allocation2 + $0x18] sm:$0xff] %vm172, %v322
      %332 = vst.msk [vmem:[#allocation2 + $0x20] sm:$0xff] %vm172, %v323
      %333 = vst.msk [vmem:[#allocation2 + $0x28] sm:$0xff] %vm172, %v324
      %334 = vst.msk [vmem:[#allocation2 + $0x30] sm:$0xff] %vm172, %v325
      %335 = vst.msk [vmem:[#allocation2 + $0x38] sm:$0xff] %vm172, %v326
      %336 = vst.msk [vmem:[#allocation2 + $0x40] sm:$0xff] %vm172, %v327
      %v337 = vld [vmem:[#allocation2] sm:$0xff]
      %v338 = vld [vmem:[#allocation2 + $0x8] sm:$0xff]
      %v339 = vld [vmem:[#allocation2 + $0x10] sm:$0xff]
      %v340 = vld [vmem:[#allocation2 + $0x18] sm:$0xff]
      %v341 = vld [vmem:[#allocation2 + $0x20] sm:$0xff]
      %v342 = vld [vmem:[#allocation2 + $0x28] sm:$0xff]
      %v343 = vld [vmem:[#allocation2 + $0x30] sm:$0xff]
      %v344 = vld [vmem:[#allocation2 + $0x38] sm:$0xff]
      %v345 = vld [vmem:[#allocation2 + $0x40] sm:$0xff]
      %v346 = vld [vmem:[%s165 + $0x28] sm:$0xf]
      %v347 = vld [vmem:[%s165 + $0x2c] sm:$0xf]
      %v348 = vld [vmem:[%s165 + $0x30] sm:$0xf]
      %v349 = vld [vmem:[%s165 + $0x34] sm:$0xf]
      %v350 = vld [vmem:[%s165 + $0x38] sm:$0xf]
      %v351 = vld [vmem:[%s165 + $0x3c] sm:$0xf]
      %v352 = vld [vmem:[%s165 + $0x40] sm:$0xf]
      %v353 = vld [vmem:[%s165 + $0x44] sm:$0xf]
      %v354 = vld [vmem:[%s165 + $0x48] sm:$0xf]
      %v355 = vld [vmem:[%s165 + $0x4c] sm:$0x1]
      %s356 = scalar_lea.vmem %s1, 2
      %v357 = vld [vmem:[%s356] sm:$0x3]
      %v368 = vunpack.c.l.b16 %v346
      %v369 = vunpack.c.l.b16 %v347
      %v370 = vunpack.c.l.b16 %v348
      %v371 = vunpack.c.l.b16 %v349
      %v372 = vunpack.c.l.b16 %v350
      %v373 = vunpack.c.l.b16 %v351
      %v374 = vunpack.c.l.b16 %v352
      %v375 = vunpack.c.l.b16 %v353
      %v376 = vunpack.c.l.b16 %v354
      %v377 = vunpack.c.l.b16 %v355
      %v378 = vpack.c.b16 %v369, %v368
      %v379 = vpack.c.b16 %v371, %v370
      %v380 = vpack.c.b16 %v373, %v372
      %v381 = vpack.c.b16 %v375, %v374
      %v382 = vpack.c.b16 %v377, %v376
      %vm383 = vsmask.f32 7424
      %v385 = vshrl.u32 %v378, 16
      %v387 = vshll.u32 %v378, 16
      %v389 = vrot.slane %v387, 1
      %v390 = vor.u32 %v385, %v389
      %v392 = vshll.u32 %v379, 16
      %v394 = vrot.slane %v392, 1
      %v395 = vsel %vm383, %v390, %v394
      %v396 = vshrl.u32 %v379, 16
      %v398 = vor.u32 %v396, %v394
      %v400 = vshll.u32 %v380, 16
      %v402 = vrot.slane %v400, 1
      %v403 = vsel %vm383, %v398, %v402
      %v404 = vshrl.u32 %v380, 16
      %v406 = vor.u32 %v404, %v402
      %v408 = vshll.u32 %v381, 16
      %v410 = vrot.slane %v408, 1
      %v411 = vsel %vm383, %v406, %v410
      %v412 = vshrl.u32 %v381, 16
      %v414 = vor.u32 %v412, %v410
      %v416 = vshll.u32 %v382, 16
      %v418 = vrot.slane %v416, 1
      %v419 = vsel %vm383, %v414, %v418
      %v420 = vshrl.u32 %v382, 16
      %v422 = vor.u32 %v420, %v418
      %v424 = vsel %vm224, %v395, 0
      %v427 = vsel %vm224, %v403, 0
      %v430 = vsel %vm224, %v411, 0
      %v433 = vsel %vm224, %v419, 0
      %v436 = vsel %vm224, %v422, 0
      %v439 = vand.u32 %v357, %v243
      %441 = vmatprep.subr.bf16.mxu0 0
      %442 = vmatpush1.bf16.msra.mxu0 %v439
      %443 = vmatprep.subr.bf16.mxu0 0
      %444 = vmatpush1.bf16.msra.mxu0 0
      %445 = vmatprep.subr.bf16.mxu0 0
      %446 = vmatpush1.bf16.msra.mxu0 0
      %447 = vmatprep.subr.bf16.mxu0 0
      %448 = vmatpush1.bf16.msra.mxu0 0
      %449 = vmatprep.subr.bf16.mxu0 0
      %450 = vmatpush1.bf16.msra.mxu0 0
      %451 = vmatprep.subr.bf16.mxu0 0
      %452 = vmatpush1.bf16.msra.mxu0 0
      %453 = vmatprep.subr.bf16.mxu0 0
      %454 = vmatpush1.bf16.msra.mxu0 0
      %455 = vmatprep.subr.bf16.mxu0 0
      %456 = vmatpush1.bf16.msra.mxu0 0
      %457 = vmatprep.subr.bf16.mxu0 0
      %458 = vmatpush1.bf16.msra.mxu0 0
      %459 = vmatprep.subr.bf16.mxu0 0
      %460 = vmatpush1.bf16.msra.mxu0 0
      %461 = vmatprep.subr.bf16.mxu0 0
      %462 = vmatpush1.bf16.msra.mxu0 0
      %463 = vmatprep.subr.bf16.mxu0 0
      %464 = vmatpush1.bf16.msra.mxu0 0
      %465 = vmatprep.subr.bf16.mxu0 0
      %466 = vmatpush1.bf16.msra.mxu0 0
      %467 = vmatprep.subr.bf16.mxu0 0
      %468 = vmatpush1.bf16.msra.mxu0 0
      %469 = vmatprep.subr.bf16.mxu0 0
      %470 = vmatpush1.bf16.msra.mxu0 0
      %471 = vmatprep.subr.bf16.mxu0 0
      %472 = vmatpush1.bf16.msra.mxu0 0
      %473 = vmatprep.mubr.bf16.mxu0 0
      %474 = vmatmul.mubr.bf16.gmra.mrb[0].mxu0 %v424
      %v475 = vpop.f32.mrb[0].mxu0
      %v476 = vadd.f32 0.0, %v475
      %v477 = vpop.f32.mrb[0].mxu0
      %v478 = vpop.f32.mrb[0].mxu0
      %v479 = vadd.f32 0.0, %v478
      %v480 = vpop.f32.mrb[0].mxu0
      %481 = vmatprep.mubr.bf16.mxu0 0
      %482 = vmatmul.mubr.bf16.gmra.mrb[0].mxu0 %v427
      %v483 = vpop.f32.mrb[0].mxu0
      %v484 = vadd.f32 0.0, %v483
      %v485 = vpop.f32.mrb[0].mxu0
      %v486 = vpop.f32.mrb[0].mxu0
      %v487 = vadd.f32 0.0, %v486
      %v488 = vpop.f32.mrb[0].mxu0
      %489 = vmatprep.mubr.bf16.mxu0 0
      %490 = vmatmul.mubr.bf16.gmra.mrb[0].mxu0 %v430
      %v491 = vpop.f32.mrb[0].mxu0
      %v492 = vadd.f32 0.0, %v491
      %v493 = vpop.f32.mrb[0].mxu0
      %v494 = vpop.f32.mrb[0].mxu0
      %v495 = vadd.f32 0.0, %v494
      %v496 = vpop.f32.mrb[0].mxu0
      %497 = vmatprep.mubr.bf16.mxu0 0
      %498 = vmatmul.mubr.bf16.gmra.mrb[0].mxu0 %v433
      %v499 = vpop.f32.mrb[0].mxu0
      %v500 = vadd.f32 0.0, %v499
      %v501 = vpop.f32.mrb[0].mxu0
      %v502 = vpop.f32.mrb[0].mxu0
      %v503 = vadd.f32 0.0, %v502
      %v504 = vpop.f32.mrb[0].mxu0
      %505 = vmatprep.mubr.bf16.mxu0 0
      %506 = vmatmul.mubr.bf16.gmra.mrb[0].mxu0 %v436
      %v507 = vpop.f32.mrb[0].mxu0
      %v508 = vadd.f32 0.0, %v507
      %v509 = vpop.f32.mrb[0].mxu0
      %v510 = vpop.f32.mrb[0].mxu0
      %v511 = vpop.f32.mrb[0].mxu0
      %512 = vdwg.mxu0
      %v513 = vadd.f32 %v337, %v476
      %v514 = vadd.f32 %v338, %v479
      %v515 = vadd.f32 %v339, %v484
      %v516 = vadd.f32 %v340, %v487
      %v517 = vadd.f32 %v341, %v492
      %v518 = vadd.f32 %v342, %v495
      %v519 = vadd.f32 %v343, %v500
      %v520 = vadd.f32 %v344, %v503
      %v521 = vadd.f32 %v345, %v508
      %522 = vst.msk [vmem:[#allocation2] sm:$0xff] %vm172, %v513
      %523 = vst.msk [vmem:[#allocation2 + $0x8] sm:$0xff] %vm172, %v514
      %524 = vst.msk [vmem:[#allocation2 + $0x10] sm:$0xff] %vm172, %v515
      %525 = vst.msk [vmem:[#allocation2 + $0x18] sm:$0xff] %vm172, %v516
      %526 = vst.msk [vmem:[#allocation2 + $0x20] sm:$0xff] %vm172, %v517
      %527 = vst.msk [vmem:[#allocation2 + $0x28] sm:$0xff] %vm172, %v518
      %528 = vst.msk [vmem:[#allocation2 + $0x30] sm:$0xff] %vm172, %v519
      %529 = vst.msk [vmem:[#allocation2 + $0x38] sm:$0xff] %vm172, %v520
      %530 = vst.msk [vmem:[#allocation2 + $0x40] sm:$0xff] %vm172, %v521
      %v531 = vld [vmem:[#allocation2] sm:$0xff]
      %v532 = vld [vmem:[#allocation2 + $0x8] sm:$0xff]
      %v533 = vld [vmem:[#allocation2 + $0x10] sm:$0xff]
      %v534 = vld [vmem:[#allocation2 + $0x18] sm:$0xff]
      %v535 = vld [vmem:[#allocation2 + $0x20] sm:$0xff]
      %v536 = vld [vmem:[#allocation2 + $0x28] sm:$0xff]
      %v537 = vld [vmem:[#allocation2 + $0x30] sm:$0xff]
      %v538 = vld [vmem:[#allocation2 + $0x38] sm:$0xff]
      %v539 = vld [vmem:[#allocation2 + $0x40] sm:$0xff]
      %v540 = vld [vmem:[%s165] sm:$0xf]
      %v541 = vld [vmem:[%s165 + $0x4] sm:$0xf]
      %v542 = vld [vmem:[%s165 + $0x8] sm:$0xf]
      %v543 = vld [vmem:[%s165 + $0xc] sm:$0xf]
      %v544 = vld [vmem:[%s165 + $0x10] sm:$0xf]
      %v545 = vld [vmem:[%s165 + $0x14] sm:$0xf]
      %v546 = vld [vmem:[%s165 + $0x18] sm:$0xf]
      %v547 = vld [vmem:[%s165 + $0x1c] sm:$0xf]
      %v548 = vld [vmem:[%s165 + $0x20] sm:$0xf]
      %v549 = vld [vmem:[%s165 + $0x24] sm:$0x1]
      %s550 = scalar_lea.vmem %s1, 4
      %v551 = vld [vmem:[%s550] sm:$0x3]
      %v562 = vunpack.c.l.b16 %v540
      %v563 = vunpack.c.l.b16 %v541
      %v564 = vunpack.c.l.b16 %v542
      %v565 = vunpack.c.l.b16 %v543
      %v566 = vunpack.c.l.b16 %v544
      %v567 = vunpack.c.l.b16 %v545
      %v568 = vunpack.c.l.b16 %v546
      %v569 = vunpack.c.l.b16 %v547
      %v570 = vunpack.c.l.b16 %v548
      %v571 = vunpack.c.l.b16 %v549
      %v572 = vpack.c.b16 %v563, %v562
      %v573 = vpack.c.b16 %v565, %v564
      %v574 = vpack.c.b16 %v567, %v566
      %v575 = vpack.c.b16 %v569, %v568
      %v576 = vpack.c.b16 %v571, %v570
      %v578 = vshrl.u32 %v572, 16
      %v580 = vshll.u32 %v572, 16
      %v582 = vrot.slane %v580, 1
      %v583 = vor.u32 %v578, %v582
      %v585 = vshll.u32 %v573, 16
      %v587 = vrot.slane %v585, 1
      %v588 = vsel %vm383, %v583, %v587
      %v589 = vshrl.u32 %v573, 16
      %v591 = vor.u32 %v589, %v587
      %v593 = vshll.u32 %v574, 16
      %v595 = vrot.slane %v593, 1
      %v596 = vsel %vm383, %v591, %v595
      %v597 = vshrl.u32 %v574, 16
      %v599 = vor.u32 %v597, %v595
      %v601 = vshll.u32 %v575, 16
      %v603 = vrot.slane %v601, 1
      %v604 = vsel %vm383, %v599, %v603
      %v605 = vshrl.u32 %v575, 16
      %v607 = vor.u32 %v605, %v603
      %v609 = vshll.u32 %v576, 16
      %v611 = vrot.slane %v609, 1
      %v612 = vsel %vm383, %v607, %v611
      %v613 = vshrl.u32 %v576, 16
      %v615 = vor.u32 %v613, %v611
      %v617 = vsel %vm224, %v588, 0
      %v620 = vsel %vm224, %v596, 0
      %v623 = vsel %vm224, %v604, 0
      %v626 = vsel %vm224, %v612, 0
      %v629 = vsel %vm224, %v615, 0
      %v632 = vand.u32 %v551, %v243
      %634 = vmatprep.subr.bf16.mxu0 0
      %635 = vmatpush1.bf16.msra.mxu0 %v632
      %636 = vmatprep.subr.bf16.mxu0 0
      %637 = vmatpush1.bf16.msra.mxu0 0
      %638 = vmatprep.subr.bf16.mxu0 0
      %639 = vmatpush1.bf16.msra.mxu0 0
      %640 = vmatprep.subr.bf16.mxu0 0
      %641 = vmatpush1.bf16.msra.mxu0 0
      %642 = vmatprep.subr.bf16.mxu0 0
      %643 = vmatpush1.bf16.msra.mxu0 0
      %644 = vmatprep.subr.bf16.mxu0 0
      %645 = vmatpush1.bf16.msra.mxu0 0
      %646 = vmatprep.subr.bf16.mxu0 0
      %647 = vmatpush1.bf16.msra.mxu0 0
      %648 = vmatprep.subr.bf16.mxu0 0
      %649 = vmatpush1.bf16.msra.mxu0 0
      %650 = vmatprep.subr.bf16.mxu0 0
      %651 = vmatpush1.bf16.msra.mxu0 0
      %652 = vmatprep.subr.bf16.mxu0 0
      %653 = vmatpush1.bf16.msra.mxu0 0
      %654 = vmatprep.subr.bf16.mxu0 0
      %655 = vmatpush1.bf16.msra.mxu0 0
      %656 = vmatprep.subr.bf16.mxu0 0
      %657 = vmatpush1.bf16.msra.mxu0 0
      %658 = vmatprep.subr.bf16.mxu0 0
      %659 = vmatpush1.bf16.msra.mxu0 0
      %660 = vmatprep.subr.bf16.mxu0 0
      %661 = vmatpush1.bf16.msra.mxu0 0
      %662 = vmatprep.subr.bf16.mxu0 0
      %663 = vmatpush1.bf16.msra.mxu0 0
      %664 = vmatprep.subr.bf16.mxu0 0
      %665 = vmatpush1.bf16.msra.mxu0 0
      %666 = vmatprep.mubr.bf16.mxu0 0
      %667 = vmatmul.mubr.bf16.gmra.mrb[0].mxu0 %v617
      %v668 = vpop.f32.mrb[0].mxu0
      %v669 = vadd.f32 0.0, %v668
      %v670 = vpop.f32.mrb[0].mxu0
      %v671 = vpop.f32.mrb[0].mxu0
      %v672 = vadd.f32 0.0, %v671
      %v673 = vpop.f32.mrb[0].mxu0
      %674 = vmatprep.mubr.bf16.mxu0 0
      %675 = vmatmul.mubr.bf16.gmra.mrb[0].mxu0 %v620
      %v676 = vpop.f32.mrb[0].mxu0
      %v677 = vadd.f32 0.0, %v676
      %v678 = vpop.f32.mrb[0].mxu0
      %v679 = vpop.f32.mrb[0].mxu0
      %v680 = vadd.f32 0.0, %v679
      %v681 = vpop.f32.mrb[0].mxu0
      %682 = vmatprep.mubr.bf16.mxu0 0
      %683 = vmatmul.mubr.bf16.gmra.mrb[0].mxu0 %v623
      %v684 = vpop.f32.mrb[0].mxu0
      %v685 = vadd.f32 0.0, %v684
      %v686 = vpop.f32.mrb[0].mxu0
      %v687 = vpop.f32.mrb[0].mxu0
      %v688 = vadd.f32 0.0, %v687
      %v689 = vpop.f32.mrb[0].mxu0
      %690 = vmatprep.mubr.bf16.mxu0 0
      %691 = vmatmul.mubr.bf16.gmra.mrb[0].mxu0 %v626
      %v692 = vpop.f32.mrb[0].mxu0
      %v693 = vadd.f32 0.0, %v692
      %v694 = vpop.f32.mrb[0].mxu0
      %v695 = vpop.f32.mrb[0].mxu0
      %v696 = vadd.f32 0.0, %v695
      %v697 = vpop.f32.mrb[0].mxu0
      %698 = vmatprep.mubr.bf16.mxu0 0
      %699 = vmatmul.mubr.bf16.gmra.mrb[0].mxu0 %v629
      %v700 = vpop.f32.mrb[0].mxu0
      %v701 = vadd.f32 0.0, %v700
      %v702 = vpop.f32.mrb[0].mxu0
      %v703 = vpop.f32.mrb[0].mxu0
      %v704 = vpop.f32.mrb[0].mxu0
      %705 = vdwg.mxu0
      %v706 = vadd.f32 %v531, %v669
      %v707 = vadd.f32 %v532, %v672
      %v708 = vadd.f32 %v533, %v677
      %v709 = vadd.f32 %v534, %v680
      %v710 = vadd.f32 %v535, %v685
      %v711 = vadd.f32 %v536, %v688
      %v712 = vadd.f32 %v537, %v693
      %v713 = vadd.f32 %v538, %v696
      %v714 = vadd.f32 %v539, %v701
      %715 = vst.msk [vmem:[#allocation2] sm:$0xff] %vm172, %v706
      %716 = vst.msk [vmem:[#allocation2 + $0x8] sm:$0xff] %vm172, %v707
      %717 = vst.msk [vmem:[#allocation2 + $0x10] sm:$0xff] %vm172, %v708
      %718 = vst.msk [vmem:[#allocation2 + $0x18] sm:$0xff] %vm172, %v709
      %719 = vst.msk [vmem:[#allocation2 + $0x20] sm:$0xff] %vm172, %v710
      %720 = vst.msk [vmem:[#allocation2 + $0x28] sm:$0xff] %vm172, %v711
      %721 = vst.msk [vmem:[#allocation2 + $0x30] sm:$0xff] %vm172, %v712
      %722 = vst.msk [vmem:[#allocation2 + $0x38] sm:$0xff] %vm172, %v713
      %723 = vst.msk [vmem:[#allocation2 + $0x40] sm:$0xff] %vm172, %v714
      %v724 = vld [vmem:[#allocation2] sm:$0xff]
      %v725 = vld [vmem:[#allocation2 + $0x8] sm:$0xff]
      %v726 = vld [vmem:[#allocation2 + $0x10] sm:$0xff]
      %v727 = vld [vmem:[#allocation2 + $0x18] sm:$0xff]
      %v728 = vld [vmem:[#allocation2 + $0x20] sm:$0xff]
      %v729 = vld [vmem:[#allocation2 + $0x28] sm:$0xff]
      %v730 = vld [vmem:[#allocation2 + $0x30] sm:$0xff]
      %v731 = vld [vmem:[#allocation2 + $0x38] sm:$0xff]
      %v732 = vld [vmem:[#allocation2 + $0x40] sm:$0xff]
      %v733 = vld [vmem:[%s165 + $0x50] sm:$0xe]
      %v734 = vld [vmem:[%s165 + $0x54] sm:$0xf]
      %v735 = vld [vmem:[%s165 + $0x58] sm:$0xf]
      %v736 = vld [vmem:[%s165 + $0x5c] sm:$0xf]
      %v737 = vld [vmem:[%s165 + $0x60] sm:$0xf]
      %v738 = vld [vmem:[%s165 + $0x64] sm:$0xf]
      %v739 = vld [vmem:[%s165 + $0x68] sm:$0xf]
      %v740 = vld [vmem:[%s165 + $0x6c] sm:$0xf]
      %v741 = vld [vmem:[%s165 + $0x70] sm:$0xf]
      %v742 = vld [vmem:[%s165 + $0x74] sm:$0x1]
      %s743 = scalar_lea.vmem %s1, 6
      %v744 = vld [vmem:[%s743] sm:$0x3]
      %v755 = vunpack.c.l.b16 %v733
      %v756 = vunpack.c.l.b16 %v734
      %v757 = vunpack.c.l.b16 %v735
      %v758 = vunpack.c.l.b16 %v736
      %v759 = vunpack.c.l.b16 %v737
      %v760 = vunpack.c.l.b16 %v738
      %v761 = vunpack.c.l.b16 %v739
      %v762 = vunpack.c.l.b16 %v740
      %v763 = vunpack.c.l.b16 %v741
      %v764 = vunpack.c.l.b16 %v742
      %v765 = vpack.c.b16 %v756, %v755
      %v766 = vpack.c.b16 %v758, %v757
      %v767 = vpack.c.b16 %v760, %v759
      %v768 = vpack.c.b16 %v762, %v761
      %v769 = vpack.c.b16 %v764, %v763
      %vm770 = vcmask 1046528
      %v771 = vrot.slane %v765, 1
      %v772 = vrot.slane %v766, 1
      %v773 = vsel %vm770, %v771, %v772
      %v774 = vrot.slane %v767, 1
      %v775 = vsel %vm770, %v772, %v774
      %v776 = vrot.slane %v768, 1
      %v777 = vsel %vm770, %v774, %v776
      %v778 = vrot.slane %v769, 1
      %v779 = vsel %vm770, %v776, %v778
      %v781 = vsel %vm224, %v773, 0
      %v784 = vsel %vm224, %v775, 0
      %v787 = vsel %vm224, %v777, 0
      %v790 = vsel %vm224, %v779, 0
      %v793 = vsel %vm224, %v778, 0
      %v796 = vand.u32 %v744, %v243
      %798 = vmatprep.subr.bf16.mxu0 0
      %799 = vmatpush1.bf16.msra.mxu0 %v796
      %800 = vmatprep.subr.bf16.mxu0 0
      %801 = vmatpush1.bf16.msra.mxu0 0
      %802 = vmatprep.subr.bf16.mxu0 0
      %803 = vmatpush1.bf16.msra.mxu0 0
      %804 = vmatprep.subr.bf16.mxu0 0
      %805 = vmatpush1.bf16.msra.mxu0 0
      %806 = vmatprep.subr.bf16.mxu0 0
      %807 = vmatpush1.bf16.msra.mxu0 0
      %808 = vmatprep.subr.bf16.mxu0 0
      %809 = vmatpush1.bf16.msra.mxu0 0
      %810 = vmatprep.subr.bf16.mxu0 0
      %811 = vmatpush1.bf16.msra.mxu0 0
      %812 = vmatprep.subr.bf16.mxu0 0
      %813 = vmatpush1.bf16.msra.mxu0 0
      %814 = vmatprep.subr.bf16.mxu0 0
      %815 = vmatpush1.bf16.msra.mxu0 0
      %816 = vmatprep.subr.bf16.mxu0 0
      %817 = vmatpush1.bf16.msra.mxu0 0
      %818 = vmatprep.subr.bf16.mxu0 0
      %819 = vmatpush1.bf16.msra.mxu0 0
      %820 = vmatprep.subr.bf16.mxu0 0
      %821 = vmatpush1.bf16.msra.mxu0 0
      %822 = vmatprep.subr.bf16.mxu0 0
      %823 = vmatpush1.bf16.msra.mxu0 0
      %824 = vmatprep.subr.bf16.mxu0 0
      %825 = vmatpush1.bf16.msra.mxu0 0
      %826 = vmatprep.subr.bf16.mxu0 0
      %827 = vmatpush1.bf16.msra.mxu0 0
      %828 = vmatprep.subr.bf16.mxu0 0
      %829 = vmatpush1.bf16.msra.mxu0 0
      %830 = vmatprep.mubr.bf16.mxu0 0
      %831 = vmatmul.mubr.bf16.gmra.mrb[0].mxu0 %v781
      %v832 = vpop.f32.mrb[0].mxu0
      %v833 = vadd.f32 0.0, %v832
      %v834 = vpop.f32.mrb[0].mxu0
      %v835 = vpop.f32.mrb[0].mxu0
      %v836 = vadd.f32 0.0, %v835
      %v837 = vpop.f32.mrb[0].mxu0
      %838 = vmatprep.mubr.bf16.mxu0 0
      %839 = vmatmul.mubr.bf16.gmra.mrb[0].mxu0 %v784
      %v840 = vpop.f32.mrb[0].mxu0
      %v841 = vadd.f32 0.0, %v840
      %v842 = vpop.f32.mrb[0].mxu0
      %v843 = vpop.f32.mrb[0].mxu0
      %v844 = vadd.f32 0.0, %v843
      %v845 = vpop.f32.mrb[0].mxu0
      %846 = vmatprep.mubr.bf16.mxu0 0
      %847 = vmatmul.mubr.bf16.gmra.mrb[0].mxu0 %v787
      %v848 = vpop.f32.mrb[0].mxu0
      %v849 = vadd.f32 0.0, %v848
      %v850 = vpop.f32.mrb[0].mxu0
      %v851 = vpop.f32.mrb[0].mxu0
      %v852 = vadd.f32 0.0, %v851
      %v853 = vpop.f32.mrb[0].mxu0
      %854 = vmatprep.mubr.bf16.mxu0 0
      %855 = vmatmul.mubr.bf16.gmra.mrb[0].mxu0 %v790
      %v856 = vpop.f32.mrb[0].mxu0
      %v857 = vadd.f32 0.0, %v856
      %v858 = vpop.f32.mrb[0].mxu0
      %v859 = vpop.f32.mrb[0].mxu0
      %v860 = vadd.f32 0.0, %v859
      %v861 = vpop.f32.mrb[0].mxu0
      %862 = vmatprep.mubr.bf16.mxu0 0
      %863 = vmatmul.mubr.bf16.gmra.mrb[0].mxu0 %v793
      %v864 = vpop.f32.mrb[0].mxu0
      %v865 = vadd.f32 0.0, %v864
      %v866 = vpop.f32.mrb[0].mxu0
      %v867 = vpop.f32.mrb[0].mxu0
      %v868 = vpop.f32.mrb[0].mxu0
      %869 = vdwg.mxu0
      %v870 = vadd.f32 %v724, %v833
      %v871 = vadd.f32 %v725, %v836
      %v872 = vadd.f32 %v726, %v841
      %v873 = vadd.f32 %v727, %v844
      %v874 = vadd.f32 %v728, %v849
      %v875 = vadd.f32 %v729, %v852
      %v876 = vadd.f32 %v730, %v857
      %v877 = vadd.f32 %v731, %v860
      %v878 = vadd.f32 %v732, %v865
      %879 = vst.msk [vmem:[#allocation2] sm:$0xff] %vm172, %v870
      %880 = vst.msk [vmem:[#allocation2 + $0x8] sm:$0xff] %vm172, %v871
      %881 = vst.msk [vmem:[#allocation2 + $0x10] sm:$0xff] %vm172, %v872
      %882 = vst.msk [vmem:[#allocation2 + $0x18] sm:$0xff] %vm172, %v873
      %883 = vst.msk [vmem:[#allocation2 + $0x20] sm:$0xff] %vm172, %v874
      %884 = vst.msk [vmem:[#allocation2 + $0x28] sm:$0xff] %vm172, %v875
      %885 = vst.msk [vmem:[#allocation2 + $0x30] sm:$0xff] %vm172, %v876
      %886 = vst.msk [vmem:[#allocation2 + $0x38] sm:$0xff] %vm172, %v877
      %887 = vst.msk [vmem:[#allocation2 + $0x40] sm:$0xff] %vm172, %v878
      %v888 = vld [vmem:[#allocation2] sm:$0xff]
      %v889 = vld [vmem:[#allocation2 + $0x8] sm:$0xff]
      %v890 = vld [vmem:[#allocation2 + $0x10] sm:$0xff]
      %v891 = vld [vmem:[#allocation2 + $0x18] sm:$0xff]
      %v892 = vld [vmem:[#allocation2 + $0x20] sm:$0xff]
      %v893 = vld [vmem:[#allocation2 + $0x28] sm:$0xff]
      %v894 = vld [vmem:[#allocation2 + $0x30] sm:$0xff]
      %v895 = vld [vmem:[#allocation2 + $0x38] sm:$0xff]
      %v896 = vld [vmem:[#allocation2 + $0x40] sm:$0xff]
      %v897 = vld [vmem:[%s165 + $0x78] sm:$0xe]
      %v898 = vld [vmem:[%s165 + $0x7c] sm:$0xf]
      %v899 = vld [vmem:[%s165 + $0x80] sm:$0xf]
      %v900 = vld [vmem:[%s165 + $0x84] sm:$0xf]
      %v901 = vld [vmem:[%s165 + $0x88] sm:$0xf]
      %v902 = vld [vmem:[%s165 + $0x8c] sm:$0xf]
      %v903 = vld [vmem:[%s165 + $0x90] sm:$0xf]
      %v904 = vld [vmem:[%s165 + $0x94] sm:$0xf]
      %v905 = vld [vmem:[%s165 + $0x98] sm:$0xf]
      %v906 = vld [vmem:[%s165 + $0x9c] sm:$0x3]
      %s907 = scalar_lea.vmem %s1, 8
      %v908 = vld [vmem:[%s907] sm:$0x3]
      %v919 = vunpack.c.l.b16 %v897
      %v920 = vunpack.c.l.b16 %v898
      %v921 = vunpack.c.l.b16 %v899
      %v922 = vunpack.c.l.b16 %v900
      %v923 = vunpack.c.l.b16 %v901
      %v924 = vunpack.c.l.b16 %v902
      %v925 = vunpack.c.l.b16 %v903
      %v926 = vunpack.c.l.b16 %v904
      %v927 = vunpack.c.l.b16 %v905
      %v928 = vunpack.c.l.b16 %v906
      %v929 = vpack.c.b16 %v920, %v919
      %v930 = vpack.c.b16 %v922, %v921
      %v931 = vpack.c.b16 %v924, %v923
      %v932 = vpack.c.b16 %v926, %v925
      %v933 = vpack.c.b16 %v928, %v927
      %vm934 = vsmask.f32 6400
      %v936 = vshrl.u32 %v929, 16
      %v938 = vrot.slane %v936, 1
      %v939 = vshll.u32 %v929, 16
      %v941 = vrot.slane %v939, 2
      %v942 = vor.u32 %v938, %v941
      %v944 = vshrl.u32 %v930, 16
      %v946 = vrot.slane %v944, 1
      %v947 = vshll.u32 %v930, 16
      %v949 = vrot.slane %v947, 2
      %v950 = vor.u32 %v946, %v949
      %v951 = vsel %vm934, %v942, %v950
      %v953 = vshrl.u32 %v931, 16
      %v955 = vrot.slane %v953, 1
      %v956 = vshll.u32 %v931, 16
      %v958 = vrot.slane %v956, 2
      %v959 = vor.u32 %v955, %v958
      %v960 = vsel %vm934, %v950, %v959
      %v962 = vshrl.u32 %v932, 16
      %v964 = vrot.slane %v962, 1
      %v965 = vshll.u32 %v932, 16
      %v967 = vrot.slane %v965, 2
      %v968 = vor.u32 %v964, %v967
      %v969 = vsel %vm934, %v959, %v968
      %v971 = vshrl.u32 %v933, 16
      %v973 = vrot.slane %v971, 1
      %v974 = vshll.u32 %v933, 16
      %v976 = vrot.slane %v974, 2
      %v977 = vor.u32 %v973, %v976
      %v978 = vsel %vm934, %v968, %v977
      %v980 = vsel %vm224, %v951, 0
      %v983 = vsel %vm224, %v960, 0
      %v986 = vsel %vm224, %v969, 0
      %v989 = vsel %vm224, %v978, 0
      %v992 = vsel %vm224, %v977, 0
      %v995 = vand.u32 %v908, %v243
      %997 = vmatprep.subr.bf16.mxu0 0
      %998 = vmatpush1.bf16.msra.mxu0 %v995
      %999 = vmatprep.subr.bf16.mxu0 0
      %1000 = vmatpush1.bf16.msra.mxu0 0
      %1001 = vmatprep.subr.bf16.mxu0 0
      %1002 = vmatpush1.bf16.msra.mxu0 0
      %1003 = vmatprep.subr.bf16.mxu0 0
      %1004 = vmatpush1.bf16.msra.mxu0 0
      %1005 = vmatprep.subr.bf16.mxu0 0
      %1006 = vmatpush1.bf16.msra.mxu0 0
      %1007 = vmatprep.subr.bf16.mxu0 0
      %1008 = vmatpush1.bf16.msra.mxu0 0
      %1009 = vmatprep.subr.bf16.mxu0 0
      %1010 = vmatpush1.bf16.msra.mxu0 0
      %1011 = vmatprep.subr.bf16.mxu0 0
      %1012 = vmatpush1.bf16.msra.mxu0 0
      %1013 = vmatprep.subr.bf16.mxu0 0
      %1014 = vmatpush1.bf16.msra.mxu0 0
      %1015 = vmatprep.subr.bf16.mxu0 0
      %1016 = vmatpush1.bf16.msra.mxu0 0
      %1017 = vmatprep.subr.bf16.mxu0 0
      %1018 = vmatpush1.bf16.msra.mxu0 0
      %1019 = vmatprep.subr.bf16.mxu0 0
      %1020 = vmatpush1.bf16.msra.mxu0 0
      %1021 = vmatprep.subr.bf16.mxu0 0
      %1022 = vmatpush1.bf16.msra.mxu0 0
      %1023 = vmatprep.subr.bf16.mxu0 0
      %1024 = vmatpush1.bf16.msra.mxu0 0
      %1025 = vmatprep.subr.bf16.mxu0 0
      %1026 = vmatpush1.bf16.msra.mxu0 0
      %1027 = vmatprep.subr.bf16.mxu0 0
      %1028 = vmatpush1.bf16.msra.mxu0 0
      %1029 = vmatprep.mubr.bf16.mxu0 0
      %1030 = vmatmul.mubr.bf16.gmra.mrb[0].mxu0 %v980
      %v1031 = vpop.f32.mrb[0].mxu0
      %v1032 = vadd.f32 0.0, %v1031
      %v1033 = vpop.f32.mrb[0].mxu0
      %v1034 = vpop.f32.mrb[0].mxu0
      %v1035 = vadd.f32 0.0, %v1034
      %v1036 = vpop.f32.mrb[0].mxu0
      %1037 = vmatprep.mubr.bf16.mxu0 0
      %1038 = vmatmul.mubr.bf16.gmra.mrb[0].mxu0 %v983
      %v1039 = vpop.f32.mrb[0].mxu0
      %v1040 = vadd.f32 0.0, %v1039
      %v1041 = vpop.f32.mrb[0].mxu0
      %v1042 = vpop.f32.mrb[0].mxu0
      %v1043 = vadd.f32 0.0, %v1042
      %v1044 = vpop.f32.mrb[0].mxu0
      %1045 = vmatprep.mubr.bf16.mxu0 0
      %1046 = vmatmul.mubr.bf16.gmra.mrb[0].mxu0 %v986
      %v1047 = vpop.f32.mrb[0].mxu0
      %v1048 = vadd.f32 0.0, %v1047
      %v1049 = vpop.f32.mrb[0].mxu0
      %v1050 = vpop.f32.mrb[0].mxu0
      %v1051 = vadd.f32 0.0, %v1050
      %v1052 = vpop.f32.mrb[0].mxu0
      %1053 = vmatprep.mubr.bf16.mxu0 0
      %1054 = vmatmul.mubr.bf16.gmra.mrb[0].mxu0 %v989
      %v1055 = vpop.f32.mrb[0].mxu0
      %v1056 = vadd.f32 0.0, %v1055
      %v1057 = vpop.f32.mrb[0].mxu0
      %v1058 = vpop.f32.mrb[0].mxu0
      %v1059 = vadd.f32 0.0, %v1058
      %v1060 = vpop.f32.mrb[0].mxu0
      %1061 = vmatprep.mubr.bf16.mxu0 0
      %1062 = vmatmul.mubr.bf16.gmra.mrb[0].mxu0 %v992
      %v1063 = vpop.f32.mrb[0].mxu0
      %v1064 = vadd.f32 0.0, %v1063
      %v1065 = vpop.f32.mrb[0].mxu0
      %v1066 = vpop.f32.mrb[0].mxu0
      %v1067 = vpop.f32.mrb[0].mxu0
      %1068 = vdwg.mxu0
      %v1069 = vadd.f32 %v888, %v1032
      %v1070 = vadd.f32 %v889, %v1035
      %v1071 = vadd.f32 %v890, %v1040
      %v1072 = vadd.f32 %v891, %v1043
      %v1073 = vadd.f32 %v892, %v1048
      %v1074 = vadd.f32 %v893, %v1051
      %v1075 = vadd.f32 %v894, %v1056
      %v1076 = vadd.f32 %v895, %v1059
      %v1077 = vadd.f32 %v896, %v1064
      %1078 = vst.msk [vmem:[#allocation2] sm:$0xff] %vm172, %v1069
      %1079 = vst.msk [vmem:[#allocation2 + $0x8] sm:$0xff] %vm172, %v1070
      %1080 = vst.msk [vmem:[#allocation2 + $0x10] sm:$0xff] %vm172, %v1071
      %1081 = vst.msk [vmem:[#allocation2 + $0x18] sm:$0xff] %vm172, %v1072
      %1082 = vst.msk [vmem:[#allocation2 + $0x20] sm:$0xff] %vm172, %v1073
      %1083 = vst.msk [vmem:[#allocation2 + $0x28] sm:$0xff] %vm172, %v1074
      %1084 = vst.msk [vmem:[#allocation2 + $0x30] sm:$0xff] %vm172, %v1075
      %1085 = vst.msk [vmem:[#allocation2 + $0x38] sm:$0xff] %vm172, %v1076
      %1086 = vst.msk [vmem:[#allocation2 + $0x40] sm:$0xff] %vm172, %v1077
      %v1087 = vld [vmem:[#allocation2] sm:$0xff]
      %v1088 = vld [vmem:[#allocation2 + $0x8] sm:$0xff]
      %v1089 = vld [vmem:[#allocation2 + $0x10] sm:$0xff]
      %v1090 = vld [vmem:[#allocation2 + $0x18] sm:$0xff]
      %v1091 = vld [vmem:[#allocation2 + $0x20] sm:$0xff]
      %v1092 = vld [vmem:[#allocation2 + $0x28] sm:$0xff]
      %v1093 = vld [vmem:[#allocation2 + $0x30] sm:$0xff]
      %v1094 = vld [vmem:[#allocation2 + $0x38] sm:$0xff]
      %v1095 = vld [vmem:[#allocation2 + $0x40] sm:$0xff]
      %v1096 = vld [vmem:[%s165 + $0x50] sm:$0xe]
      %v1097 = vld [vmem:[%s165 + $0x54] sm:$0xf]
      %v1098 = vld [vmem:[%s165 + $0x58] sm:$0xf]
      %v1099 = vld [vmem:[%s165 + $0x5c] sm:$0xf]
      %v1100 = vld [vmem:[%s165 + $0x60] sm:$0xf]
      %v1101 = vld [vmem:[%s165 + $0x64] sm:$0xf]
      %v1102 = vld [vmem:[%s165 + $0x68] sm:$0xf]
      %v1103 = vld [vmem:[%s165 + $0x6c] sm:$0xf]
      %v1104 = vld [vmem:[%s165 + $0x70] sm:$0xf]
      %v1105 = vld [vmem:[%s165 + $0x74] sm:$0x3]
      %s1106 = scalar_lea.vmem %s1, 10
      %v1107 = vld [vmem:[%s1106] sm:$0x3]
      %v1118 = vunpack.c.l.b16 %v1096
      %v1119 = vunpack.c.l.b16 %v1097
      %v1120 = vunpack.c.l.b16 %v1098
      %v1121 = vunpack.c.l.b16 %v1099
      %v1122 = vunpack.c.l.b16 %v1100
      %v1123 = vunpack.c.l.b16 %v1101
      %v1124 = vunpack.c.l.b16 %v1102
      %v1125 = vunpack.c.l.b16 %v1103
      %v1126 = vunpack.c.l.b16 %v1104
      %v1127 = vunpack.c.l.b16 %v1105
      %v1128 = vpack.c.b16 %v1119, %v1118
      %v1129 = vpack.c.b16 %v1121, %v1120
      %v1130 = vpack.c.b16 %v1123, %v1122
      %v1131 = vpack.c.b16 %v1125, %v1124
      %v1132 = vpack.c.b16 %v1127, %v1126
      %v1134 = vshrl.u32 %v1128, 16
      %v1136 = vrot.slane %v1134, 1
      %v1137 = vshll.u32 %v1128, 16
      %v1139 = vrot.slane %v1137, 2
      %v1140 = vor.u32 %v1136, %v1139
      %v1142 = vshrl.u32 %v1129, 16
      %v1144 = vrot.slane %v1142, 1
      %v1145 = vshll.u32 %v1129, 16
      %v1147 = vrot.slane %v1145, 2
      %v1148 = vor.u32 %v1144, %v1147
      %v1149 = vsel %vm934, %v1140, %v1148
      %v1151 = vshrl.u32 %v1130, 16
      %v1153 = vrot.slane %v1151, 1
      %v1154 = vshll.u32 %v1130, 16
      %v1156 = vrot.slane %v1154, 2
      %v1157 = vor.u32 %v1153, %v1156
      %v1158 = vsel %vm934, %v1148, %v1157
      %v1160 = vshrl.u32 %v1131, 16
      %v1162 = vrot.slane %v1160, 1
      %v1163 = vshll.u32 %v1131, 16
      %v1165 = vrot.slane %v1163, 2
      %v1166 = vor.u32 %v1162, %v1165
      %v1167 = vsel %vm934, %v1157, %v1166
      %v1169 = vshrl.u32 %v1132, 16
      %v1171 = vrot.slane %v1169, 1
      %v1172 = vshll.u32 %v1132, 16
      %v1174 = vrot.slane %v1172, 2
      %v1175 = vor.u32 %v1171, %v1174
      %v1176 = vsel %vm934, %v1166, %v1175
      %v1178 = vsel %vm224, %v1149, 0
      %v1181 = vsel %vm224, %v1158, 0
      %v1184 = vsel %vm224, %v1167, 0
      %v1187 = vsel %vm224, %v1176, 0
      %v1190 = vsel %vm224, %v1175, 0
      %v1193 = vand.u32 %v1107, %v243
      %1195 = vmatprep.subr.bf16.mxu0 0
      %1196 = vmatpush1.bf16.msra.mxu0 %v1193
      %1197 = vmatprep.subr.bf16.mxu0 0
      %1198 = vmatpush1.bf16.msra.mxu0 0
      %1199 = vmatprep.subr.bf16.mxu0 0
      %1200 = vmatpush1.bf16.msra.mxu0 0
      %1201 = vmatprep.subr.bf16.mxu0 0
      %1202 = vmatpush1.bf16.msra.mxu0 0
      %1203 = vmatprep.subr.bf16.mxu0 0
      %1204 = vmatpush1.bf16.msra.mxu0 0
      %1205 = vmatprep.subr.bf16.mxu0 0
      %1206 = vmatpush1.bf16.msra.mxu0 0
      %1207 = vmatprep.subr.bf16.mxu0 0
      %1208 = vmatpush1.bf16.msra.mxu0 0
      %1209 = vmatprep.subr.bf16.mxu0 0
      %1210 = vmatpush1.bf16.msra.mxu0 0
      %1211 = vmatprep.subr.bf16.mxu0 0
      %1212 = vmatpush1.bf16.msra.mxu0 0
      %1213 = vmatprep.subr.bf16.mxu0 0
      %1214 = vmatpush1.bf16.msra.mxu0 0
      %1215 = vmatprep.subr.bf16.mxu0 0
      %1216 = vmatpush1.bf16.msra.mxu0 0
      %1217 = vmatprep.subr.bf16.mxu0 0
      %1218 = vmatpush1.bf16.msra.mxu0 0
      %1219 = vmatprep.subr.bf16.mxu0 0
      %1220 = vmatpush1.bf16.msra.mxu0 0
      %1221 = vmatprep.subr.bf16.mxu0 0
      %1222 = vmatpush1.bf16.msra.mxu0 0
      %1223 = vmatprep.subr.bf16.mxu0 0
      %1224 = vmatpush1.bf16.msra.mxu0 0
      %1225 = vmatprep.subr.bf16.mxu0 0
      %1226 = vmatpush1.bf16.msra.mxu0 0
      %1227 = vmatprep.mubr.bf16.mxu0 0
      %1228 = vmatmul.mubr.bf16.gmra.mrb[0].mxu0 %v1178
      %v1229 = vpop.f32.mrb[0].mxu0
      %v1230 = vadd.f32 0.0, %v1229
      %v1231 = vpop.f32.mrb[0].mxu0
      %v1232 = vpop.f32.mrb[0].mxu0
      %v1233 = vadd.f32 0.0, %v1232
      %v1234 = vpop.f32.mrb[0].mxu0
      %1235 = vmatprep.mubr.bf16.mxu0 0
      %1236 = vmatmul.mubr.bf16.gmra.mrb[0].mxu0 %v1181
      %v1237 = vpop.f32.mrb[0].mxu0
      %v1238 = vadd.f32 0.0, %v1237
      %v1239 = vpop.f32.mrb[0].mxu0
      %v1240 = vpop.f32.mrb[0].mxu0
      %v1241 = vadd.f32 0.0, %v1240
      %v1242 = vpop.f32.mrb[0].mxu0
      %1243 = vmatprep.mubr.bf16.mxu0 0
      %1244 = vmatmul.mubr.bf16.gmra.mrb[0].mxu0 %v1184
      %v1245 = vpop.f32.mrb[0].mxu0
      %v1246 = vadd.f32 0.0, %v1245
      %v1247 = vpop.f32.mrb[0].mxu0
      %v1248 = vpop.f32.mrb[0].mxu0
      %v1249 = vadd.f32 0.0, %v1248
      %v1250 = vpop.f32.mrb[0].mxu0
      %1251 = vmatprep.mubr.bf16.mxu0 0
      %1252 = vmatmul.mubr.bf16.gmra.mrb[0].mxu0 %v1187
      %v1253 = vpop.f32.mrb[0].mxu0
      %v1254 = vadd.f32 0.0, %v1253
      %v1255 = vpop.f32.mrb[0].mxu0
      %v1256 = vpop.f32.mrb[0].mxu0
      %v1257 = vadd.f32 0.0, %v1256
      %v1258 = vpop.f32.mrb[0].mxu0
      %1259 = vmatprep.mubr.bf16.mxu0 0
      %1260 = vmatmul.mubr.bf16.gmra.mrb[0].mxu0 %v1190
      %v1261 = vpop.f32.mrb[0].mxu0
      %v1262 = vadd.f32 0.0, %v1261
      %v1263 = vpop.f32.mrb[0].mxu0
      %v1264 = vpop.f32.mrb[0].mxu0
      %v1265 = vpop.f32.mrb[0].mxu0
      %1266 = vdwg.mxu0
      %v1267 = vadd.f32 %v1087, %v1230
      %v1268 = vadd.f32 %v1088, %v1233
      %v1269 = vadd.f32 %v1089, %v1238
      %v1270 = vadd.f32 %v1090, %v1241
      %v1271 = vadd.f32 %v1091, %v1246
      %v1272 = vadd.f32 %v1092, %v1249
      %v1273 = vadd.f32 %v1093, %v1254
      %v1274 = vadd.f32 %v1094, %v1257
      %v1275 = vadd.f32 %v1095, %v1262
      %1276 = vst.msk [vmem:[#allocation2] sm:$0xff] %vm172, %v1267
      %1277 = vst.msk [vmem:[#allocation2 + $0x8] sm:$0xff] %vm172, %v1268
      %1278 = vst.msk [vmem:[#allocation2 + $0x10] sm:$0xff] %vm172, %v1269
      %1279 = vst.msk [vmem:[#allocation2 + $0x18] sm:$0xff] %vm172, %v1270
      %1280 = vst.msk [vmem:[#allocation2 + $0x20] sm:$0xff] %vm172, %v1271
      %1281 = vst.msk [vmem:[#allocation2 + $0x28] sm:$0xff] %vm172, %v1272
      %1282 = vst.msk [vmem:[#allocation2 + $0x30] sm:$0xff] %vm172, %v1273
      %1283 = vst.msk [vmem:[#allocation2 + $0x38] sm:$0xff] %vm172, %v1274
      %1284 = vst.msk [vmem:[#allocation2 + $0x40] sm:$0xff] %vm172, %v1275
      %v1285 = vld [vmem:[#allocation2] sm:$0xff]
      %v1286 = vld [vmem:[#allocation2 + $0x8] sm:$0xff]
      %v1287 = vld [vmem:[#allocation2 + $0x10] sm:$0xff]
      %v1288 = vld [vmem:[#allocation2 + $0x18] sm:$0xff]
      %v1289 = vld [vmem:[#allocation2 + $0x20] sm:$0xff]
      %v1290 = vld [vmem:[#allocation2 + $0x28] sm:$0xff]
      %v1291 = vld [vmem:[#allocation2 + $0x30] sm:$0xff]
      %v1292 = vld [vmem:[#allocation2 + $0x38] sm:$0xff]
      %v1293 = vld [vmem:[#allocation2 + $0x40] sm:$0xff]
      %v1294 = vld [vmem:[%s165 + $0x4] sm:$0xf]
      %v1295 = vld [vmem:[%s165 + $0x8] sm:$0xf]
      %v1296 = vld [vmem:[%s165 + $0xc] sm:$0xf]
      %v1297 = vld [vmem:[%s165 + $0x10] sm:$0xf]
      %v1298 = vld [vmem:[%s165 + $0x14] sm:$0xf]
      %v1299 = vld [vmem:[%s165 + $0x18] sm:$0xf]
      %v1300 = vld [vmem:[%s165 + $0x1c] sm:$0xf]
      %v1301 = vld [vmem:[%s165 + $0x20] sm:$0xf]
      %v1302 = vld [vmem:[%s165 + $0x24] sm:$0xf]
      %v1303 = vld [vmem:[%s165 + $0x28] sm:$0x1]
      %s1304 = scalar_lea.vmem %s1, 12
      %v1305 = vld [vmem:[%s1304] sm:$0x3]
      %v1316 = vunpack.c.l.b16 %v1294
      %v1317 = vunpack.c.l.b16 %v1295
      %v1318 = vunpack.c.l.b16 %v1296
      %v1319 = vunpack.c.l.b16 %v1297
      %v1320 = vunpack.c.l.b16 %v1298
      %v1321 = vunpack.c.l.b16 %v1299
      %v1322 = vunpack.c.l.b16 %v1300
      %v1323 = vunpack.c.l.b16 %v1301
      %v1324 = vunpack.c.l.b16 %v1302
      %v1325 = vunpack.c.l.b16 %v1303
      %v1326 = vpack.c.b16 %v1317, %v1316
      %v1327 = vpack.c.b16 %v1319, %v1318
      %v1328 = vpack.c.b16 %v1321, %v1320
      %v1329 = vpack.c.b16 %v1323, %v1322
      %v1330 = vpack.c.b16 %v1325, %v1324
      %v1332 = vshrl.u32 %v1326, 16
      %v1334 = vshll.u32 %v1326, 16
      %v1336 = vrot.slane %v1334, 1
      %v1337 = vor.u32 %v1332, %v1336
      %v1339 = vshll.u32 %v1327, 16
      %v1341 = vrot.slane %v1339, 1
      %v1342 = vsel %vm383, %v1337, %v1341
      %v1343 = vshrl.u32 %v1327, 16
      %v1345 = vor.u32 %v1343, %v1341
      %v1347 = vshll.u32 %v1328, 16
      %v1349 = vrot.slane %v1347, 1
      %v1350 = vsel %vm383, %v1345, %v1349
      %v1351 = vshrl.u32 %v1328, 16
      %v1353 = vor.u32 %v1351, %v1349
      %v1355 = vshll.u32 %v1329, 16
      %v1357 = vrot.slane %v1355, 1
      %v1358 = vsel %vm383, %v1353, %v1357
      %v1359 = vshrl.u32 %v1329, 16
      %v1361 = vor.u32 %v1359, %v1357
      %v1363 = vshll.u32 %v1330, 16
      %v1365 = vrot.slane %v1363, 1
      %v1366 = vsel %vm383, %v1361, %v1365
      %v1367 = vshrl.u32 %v1330, 16
      %v1369 = vor.u32 %v1367, %v1365
      %v1371 = vsel %vm224, %v1342, 0
      %v1374 = vsel %vm224, %v1350, 0
      %v1377 = vsel %vm224, %v1358, 0
      %v1380 = vsel %vm224, %v1366, 0
      %v1383 = vsel %vm224, %v1369, 0
      %v1386 = vand.u32 %v1305, %v243
      %1388 = vmatprep.subr.bf16.mxu0 0
      %1389 = vmatpush1.bf16.msra.mxu0 %v1386
      %1390 = vmatprep.subr.bf16.mxu0 0
      %1391 = vmatpush1.bf16.msra.mxu0 0
      %1392 = vmatprep.subr.bf16.mxu0 0
      %1393 = vmatpush1.bf16.msra.mxu0 0
      %1394 = vmatprep.subr.bf16.mxu0 0
      %1395 = vmatpush1.bf16.msra.mxu0 0
      %1396 = vmatprep.subr.bf16.mxu0 0
      %1397 = vmatpush1.bf16.msra.mxu0 0
      %1398 = vmatprep.subr.bf16.mxu0 0
      %1399 = vmatpush1.bf16.msra.mxu0 0
      %1400 = vmatprep.subr.bf16.mxu0 0
      %1401 = vmatpush1.bf16.msra.mxu0 0
      %1402 = vmatprep.subr.bf16.mxu0 0
      %1403 = vmatpush1.bf16.msra.mxu0 0
      %1404 = vmatprep.subr.bf16.mxu0 0
      %1405 = vmatpush1.bf16.msra.mxu0 0
      %1406 = vmatprep.subr.bf16.mxu0 0
      %1407 = vmatpush1.bf16.msra.mxu0 0
      %1408 = vmatprep.subr.bf16.mxu0 0
      %1409 = vmatpush1.bf16.msra.mxu0 0
      %1410 = vmatprep.subr.bf16.mxu0 0
      %1411 = vmatpush1.bf16.msra.mxu0 0
      %1412 = vmatprep.subr.bf16.mxu0 0
      %1413 = vmatpush1.bf16.msra.mxu0 0
      %1414 = vmatprep.subr.bf16.mxu0 0
      %1415 = vmatpush1.bf16.msra.mxu0 0
      %1416 = vmatprep.subr.bf16.mxu0 0
      %1417 = vmatpush1.bf16.msra.mxu0 0
      %1418 = vmatprep.subr.bf16.mxu0 0
      %1419 = vmatpush1.bf16.msra.mxu0 0
      %1420 = vmatprep.mubr.bf16.mxu0 0
      %1421 = vmatmul.mubr.bf16.gmra.mrb[0].mxu0 %v1371
      %v1422 = vpop.f32.mrb[0].mxu0
      %v1423 = vadd.f32 0.0, %v1422
      %v1424 = vpop.f32.mrb[0].mxu0
      %v1425 = vpop.f32.mrb[0].mxu0
      %v1426 = vadd.f32 0.0, %v1425
      %v1427 = vpop.f32.mrb[0].mxu0
      %1428 = vmatprep.mubr.bf16.mxu0 0
      %1429 = vmatmul.mubr.bf16.gmra.mrb[0].mxu0 %v1374
      %v1430 = vpop.f32.mrb[0].mxu0
      %v1431 = vadd.f32 0.0, %v1430
      %v1432 = vpop.f32.mrb[0].mxu0
      %v1433 = vpop.f32.mrb[0].mxu0
      %v1434 = vadd.f32 0.0, %v1433
      %v1435 = vpop.f32.mrb[0].mxu0
      %1436 = vmatprep.mubr.bf16.mxu0 0
      %1437 = vmatmul.mubr.bf16.gmra.mrb[0].mxu0 %v1377
      %v1438 = vpop.f32.mrb[0].mxu0
      %v1439 = vadd.f32 0.0, %v1438
      %v1440 = vpop.f32.mrb[0].mxu0
      %v1441 = vpop.f32.mrb[0].mxu0
      %v1442 = vadd.f32 0.0, %v1441
      %v1443 = vpop.f32.mrb[0].mxu0
      %1444 = vmatprep.mubr.bf16.mxu0 0
      %1445 = vmatmul.mubr.bf16.gmra.mrb[0].mxu0 %v1380
      %v1446 = vpop.f32.mrb[0].mxu0
      %v1447 = vadd.f32 0.0, %v1446
      %v1448 = vpop.f32.mrb[0].mxu0
      %v1449 = vpop.f32.mrb[0].mxu0
      %v1450 = vadd.f32 0.0, %v1449
      %v1451 = vpop.f32.mrb[0].mxu0
      %1452 = vmatprep.mubr.bf16.mxu0 0
      %1453 = vmatmul.mubr.bf16.gmra.mrb[0].mxu0 %v1383
      %v1454 = vpop.f32.mrb[0].mxu0
      %v1455 = vadd.f32 0.0, %v1454
      %v1456 = vpop.f32.mrb[0].mxu0
      %v1457 = vpop.f32.mrb[0].mxu0
      %v1458 = vpop.f32.mrb[0].mxu0
      %1459 = vdwg.mxu0
      %v1460 = vadd.f32 %v1285, %v1423
      %v1461 = vadd.f32 %v1286, %v1426
      %v1462 = vadd.f32 %v1287, %v1431
      %v1463 = vadd.f32 %v1288, %v1434
      %v1464 = vadd.f32 %v1289, %v1439
      %v1465 = vadd.f32 %v1290, %v1442
      %v1466 = vadd.f32 %v1291, %v1447
      %v1467 = vadd.f32 %v1292, %v1450
      %v1468 = vadd.f32 %v1293, %v1455
      %1469 = vst.msk [vmem:[#allocation2] sm:$0xff] %vm172, %v1460
      %1470 = vst.msk [vmem:[#allocation2 + $0x8] sm:$0xff] %vm172, %v1461
      %1471 = vst.msk [vmem:[#allocation2 + $0x10] sm:$0xff] %vm172, %v1462
      %1472 = vst.msk [vmem:[#allocation2 + $0x18] sm:$0xff] %vm172, %v1463
      %1473 = vst.msk [vmem:[#allocation2 + $0x20] sm:$0xff] %vm172, %v1464
      %1474 = vst.msk [vmem:[#allocation2 + $0x28] sm:$0xff] %vm172, %v1465
      %1475 = vst.msk [vmem:[#allocation2 + $0x30] sm:$0xff] %vm172, %v1466
      %1476 = vst.msk [vmem:[#allocation2 + $0x38] sm:$0xff] %vm172, %v1467
      %1477 = vst.msk [vmem:[#allocation2 + $0x40] sm:$0xff] %vm172, %v1468
      %v1478 = vld [vmem:[#allocation2] sm:$0xff]
      %v1479 = vld [vmem:[#allocation2 + $0x8] sm:$0xff]
      %v1480 = vld [vmem:[#allocation2 + $0x10] sm:$0xff]
      %v1481 = vld [vmem:[#allocation2 + $0x18] sm:$0xff]
      %v1482 = vld [vmem:[#allocation2 + $0x20] sm:$0xff]
      %v1483 = vld [vmem:[#allocation2 + $0x28] sm:$0xff]
      %v1484 = vld [vmem:[#allocation2 + $0x30] sm:$0xff]
      %v1485 = vld [vmem:[#allocation2 + $0x38] sm:$0xff]
      %v1486 = vld [vmem:[#allocation2 + $0x40] sm:$0xff]
      %v1487 = vld [vmem:[%s165 + $0x2c] sm:$0xe]
      %v1488 = vld [vmem:[%s165 + $0x30] sm:$0xf]
      %v1489 = vld [vmem:[%s165 + $0x34] sm:$0xf]
      %v1490 = vld [vmem:[%s165 + $0x38] sm:$0xf]
      %v1491 = vld [vmem:[%s165 + $0x3c] sm:$0xf]
      %v1492 = vld [vmem:[%s165 + $0x40] sm:$0xf]
      %v1493 = vld [vmem:[%s165 + $0x44] sm:$0xf]
      %v1494 = vld [vmem:[%s165 + $0x48] sm:$0xf]
      %v1495 = vld [vmem:[%s165 + $0x4c] sm:$0xf]
      %v1496 = vld [vmem:[%s165 + $0x50] sm:$0x1]
      %s1497 = scalar_lea.vmem %s1, 14
      %v1498 = vld [vmem:[%s1497] sm:$0x3]
      %v1509 = vunpack.c.l.b16 %v1487
      %v1510 = vunpack.c.l.b16 %v1488
      %v1511 = vunpack.c.l.b16 %v1489
      %v1512 = vunpack.c.l.b16 %v1490
      %v1513 = vunpack.c.l.b16 %v1491
      %v1514 = vunpack.c.l.b16 %v1492
      %v1515 = vunpack.c.l.b16 %v1493
      %v1516 = vunpack.c.l.b16 %v1494
      %v1517 = vunpack.c.l.b16 %v1495
      %v1518 = vunpack.c.l.b16 %v1496
      %v1519 = vpack.c.b16 %v1510, %v1509
      %v1520 = vpack.c.b16 %v1512, %v1511
      %v1521 = vpack.c.b16 %v1514, %v1513
      %v1522 = vpack.c.b16 %v1516, %v1515
      %v1523 = vpack.c.b16 %v1518, %v1517
      %v1524 = vrot.slane %v1519, 1
      %v1525 = vrot.slane %v1520, 1
      %v1526 = vsel %vm770, %v1524, %v1525
      %v1527 = vrot.slane %v1521, 1
      %v1528 = vsel %vm770, %v1525, %v1527
      %v1529 = vrot.slane %v1522, 1
      %v1530 = vsel %vm770, %v1527, %v1529
      %v1531 = vrot.slane %v1523, 1
      %v1532 = vsel %vm770, %v1529, %v1531
      %v1534 = vsel %vm224, %v1526, 0
      %v1537 = vsel %vm224, %v1528, 0
      %v1540 = vsel %vm224, %v1530, 0
      %v1543 = vsel %vm224, %v1532, 0
      %v1546 = vsel %vm224, %v1531, 0
      %v1549 = vand.u32 %v1498, %v243
      %1551 = vmatprep.subr.bf16.mxu0 0
      %1552 = vmatpush1.bf16.msra.mxu0 %v1549
      %1553 = vmatprep.subr.bf16.mxu0 0
      %1554 = vmatpush1.bf16.msra.mxu0 0
      %1555 = vmatprep.subr.bf16.mxu0 0
      %1556 = vmatpush1.bf16.msra.mxu0 0
      %1557 = vmatprep.subr.bf16.mxu0 0
      %1558 = vmatpush1.bf16.msra.mxu0 0
      %1559 = vmatprep.subr.bf16.mxu0 0
      %1560 = vmatpush1.bf16.msra.mxu0 0
      %1561 = vmatprep.subr.bf16.mxu0 0
      %1562 = vmatpush1.bf16.msra.mxu0 0
      %1563 = vmatprep.subr.bf16.mxu0 0
      %1564 = vmatpush1.bf16.msra.mxu0 0
      %1565 = vmatprep.subr.bf16.mxu0 0
      %1566 = vmatpush1.bf16.msra.mxu0 0
      %1567 = vmatprep.subr.bf16.mxu0 0
      %1568 = vmatpush1.bf16.msra.mxu0 0
      %1569 = vmatprep.subr.bf16.mxu0 0
      %1570 = vmatpush1.bf16.msra.mxu0 0
      %1571 = vmatprep.subr.bf16.mxu0 0
      %1572 = vmatpush1.bf16.msra.mxu0 0
      %1573 = vmatprep.subr.bf16.mxu0 0
      %1574 = vmatpush1.bf16.msra.mxu0 0
      %1575 = vmatprep.subr.bf16.mxu0 0
      %1576 = vmatpush1.bf16.msra.mxu0 0
      %1577 = vmatprep.subr.bf16.mxu0 0
      %1578 = vmatpush1.bf16.msra.mxu0 0
      %1579 = vmatprep.subr.bf16.mxu0 0
      %1580 = vmatpush1.bf16.msra.mxu0 0
      %1581 = vmatprep.subr.bf16.mxu0 0
      %1582 = vmatpush1.bf16.msra.mxu0 0
      %1583 = vmatprep.mubr.bf16.mxu0 0
      %1584 = vmatmul.mubr.bf16.gmra.mrb[0].mxu0 %v1534
      %v1585 = vpop.f32.mrb[0].mxu0
      %v1586 = vadd.f32 0.0, %v1585
      %v1587 = vpop.f32.mrb[0].mxu0
      %v1588 = vpop.f32.mrb[0].mxu0
      %v1589 = vadd.f32 0.0, %v1588
      %v1590 = vpop.f32.mrb[0].mxu0
      %1591 = vmatprep.mubr.bf16.mxu0 0
      %1592 = vmatmul.mubr.bf16.gmra.mrb[0].mxu0 %v1537
      %v1593 = vpop.f32.mrb[0].mxu0
      %v1594 = vadd.f32 0.0, %v1593
      %v1595 = vpop.f32.mrb[0].mxu0
      %v1596 = vpop.f32.mrb[0].mxu0
      %v1597 = vadd.f32 0.0, %v1596
      %v1598 = vpop.f32.mrb[0].mxu0
      %1599 = vmatprep.mubr.bf16.mxu0 0
      %1600 = vmatmul.mubr.bf16.gmra.mrb[0].mxu0 %v1540
      %v1601 = vpop.f32.mrb[0].mxu0
      %v1602 = vadd.f32 0.0, %v1601
      %v1603 = vpop.f32.mrb[0].mxu0
      %v1604 = vpop.f32.mrb[0].mxu0
      %v1605 = vadd.f32 0.0, %v1604
      %v1606 = vpop.f32.mrb[0].mxu0
      %1607 = vmatprep.mubr.bf16.mxu0 0
      %1608 = vmatmul.mubr.bf16.gmra.mrb[0].mxu0 %v1543
      %v1609 = vpop.f32.mrb[0].mxu0
      %v1610 = vadd.f32 0.0, %v1609
      %v1611 = vpop.f32.mrb[0].mxu0
      %v1612 = vpop.f32.mrb[0].mxu0
      %v1613 = vadd.f32 0.0, %v1612
      %v1614 = vpop.f32.mrb[0].mxu0
      %1615 = vmatprep.mubr.bf16.mxu0 0
      %1616 = vmatmul.mubr.bf16.gmra.mrb[0].mxu0 %v1546
      %v1617 = vpop.f32.mrb[0].mxu0
      %v1618 = vadd.f32 0.0, %v1617
      %v1619 = vpop.f32.mrb[0].mxu0
      %v1620 = vpop.f32.mrb[0].mxu0
      %v1621 = vpop.f32.mrb[0].mxu0
      %1622 = vdwg.mxu0
      %v1623 = vadd.f32 %v1478, %v1586
      %v1624 = vadd.f32 %v1479, %v1589
      %v1625 = vadd.f32 %v1480, %v1594
      %v1626 = vadd.f32 %v1481, %v1597
      %v1627 = vadd.f32 %v1482, %v1602
      %v1628 = vadd.f32 %v1483, %v1605
      %v1629 = vadd.f32 %v1484, %v1610
      %v1630 = vadd.f32 %v1485, %v1613
      %v1631 = vadd.f32 %v1486, %v1618
      %1632 = vst.msk [vmem:[#allocation2] sm:$0xff] %vm172, %v1623
      %1633 = vst.msk [vmem:[#allocation2 + $0x8] sm:$0xff] %vm172, %v1624
      %1634 = vst.msk [vmem:[#allocation2 + $0x10] sm:$0xff] %vm172, %v1625
      %1635 = vst.msk [vmem:[#allocation2 + $0x18] sm:$0xff] %vm172, %v1626
      %1636 = vst.msk [vmem:[#allocation2 + $0x20] sm:$0xff] %vm172, %v1627
      %1637 = vst.msk [vmem:[#allocation2 + $0x28] sm:$0xff] %vm172, %v1628
      %1638 = vst.msk [vmem:[#allocation2 + $0x30] sm:$0xff] %vm172, %v1629
      %1639 = vst.msk [vmem:[#allocation2 + $0x38] sm:$0xff] %vm172, %v1630
      %1640 = vst.msk [vmem:[#allocation2 + $0x40] sm:$0xff] %vm172, %v1631
      %v1641 = vld [vmem:[#allocation2] sm:$0xff]
      %v1642 = vld [vmem:[#allocation2 + $0x8] sm:$0xff]
      %v1643 = vld [vmem:[#allocation2 + $0x10] sm:$0xff]
      %v1644 = vld [vmem:[#allocation2 + $0x18] sm:$0xff]
      %v1645 = vld [vmem:[#allocation2 + $0x20] sm:$0xff]
      %v1646 = vld [vmem:[#allocation2 + $0x28] sm:$0xff]
      %v1647 = vld [vmem:[#allocation2 + $0x30] sm:$0xff]
      %v1648 = vld [vmem:[#allocation2 + $0x38] sm:$0xff]
      %v1649 = vld [vmem:[#allocation2 + $0x40] sm:$0xff]
      %v1650 = vld [vmem:[%s165 + $0x4] sm:$0xe]
      %v1651 = vld [vmem:[%s165 + $0x8] sm:$0xf]
      %v1652 = vld [vmem:[%s165 + $0xc] sm:$0xf]
      %v1653 = vld [vmem:[%s165 + $0x10] sm:$0xf]
      %v1654 = vld [vmem:[%s165 + $0x14] sm:$0xf]
      %v1655 = vld [vmem:[%s165 + $0x18] sm:$0xf]
      %v1656 = vld [vmem:[%s165 + $0x1c] sm:$0xf]
      %v1657 = vld [vmem:[%s165 + $0x20] sm:$0xf]
      %v1658 = vld [vmem:[%s165 + $0x24] sm:$0xf]
      %v1659 = vld [vmem:[%s165 + $0x28] sm:$0x1]
      %s1660 = scalar_lea.vmem %s1, 16
      %v1661 = vld [vmem:[%s1660] sm:$0x3]
      %v1672 = vunpack.c.l.b16 %v1650
      %v1673 = vunpack.c.l.b16 %v1651
      %v1674 = vunpack.c.l.b16 %v1652
      %v1675 = vunpack.c.l.b16 %v1653
      %v1676 = vunpack.c.l.b16 %v1654
      %v1677 = vunpack.c.l.b16 %v1655
      %v1678 = vunpack.c.l.b16 %v1656
      %v1679 = vunpack.c.l.b16 %v1657
      %v1680 = vunpack.c.l.b16 %v1658
      %v1681 = vunpack.c.l.b16 %v1659
      %v1682 = vpack.c.b16 %v1673, %v1672
      %v1683 = vpack.c.b16 %v1675, %v1674
      %v1684 = vpack.c.b16 %v1677, %v1676
      %v1685 = vpack.c.b16 %v1679, %v1678
      %v1686 = vpack.c.b16 %v1681, %v1680
      %v1687 = vrot.slane %v1682, 1
      %v1688 = vrot.slane %v1683, 1
      %v1689 = vsel %vm770, %v1687, %v1688
      %v1690 = vrot.slane %v1684, 1
      %v1691 = vsel %vm770, %v1688, %v1690
      %v1692 = vrot.slane %v1685, 1
      %v1693 = vsel %vm770, %v1690, %v1692
      %v1694 = vrot.slane %v1686, 1
      %v1695 = vsel %vm770, %v1692, %v1694
      %v1697 = vsel %vm224, %v1689, 0
      %v1700 = vsel %vm224, %v1691, 0
      %v1703 = vsel %vm224, %v1693, 0
      %v1706 = vsel %vm224, %v1695, 0
      %v1709 = vsel %vm224, %v1694, 0
      %v1712 = vand.u32 %v1661, %v243
      %1714 = vmatprep.subr.bf16.mxu0 0
      %1715 = vmatpush1.bf16.msra.mxu0 %v1712
      %1716 = vmatprep.subr.bf16.mxu0 0
      %1717 = vmatpush1.bf16.msra.mxu0 0
      %1718 = vmatprep.subr.bf16.mxu0 0
      %1719 = vmatpush1.bf16.msra.mxu0 0
      %1720 = vmatprep.subr.bf16.mxu0 0
      %1721 = vmatpush1.bf16.msra.mxu0 0
      %1722 = vmatprep.subr.bf16.mxu0 0
      %1723 = vmatpush1.bf16.msra.mxu0 0
      %1724 = vmatprep.subr.bf16.mxu0 0
      %1725 = vmatpush1.bf16.msra.mxu0 0
      %1726 = vmatprep.subr.bf16.mxu0 0
      %1727 = vmatpush1.bf16.msra.mxu0 0
      %1728 = vmatprep.subr.bf16.mxu0 0
      %1729 = vmatpush1.bf16.msra.mxu0 0
      %1730 = vmatprep.subr.bf16.mxu0 0
      %1731 = vmatpush1.bf16.msra.mxu0 0
      %1732 = vmatprep.subr.bf16.mxu0 0
      %1733 = vmatpush1.bf16.msra.mxu0 0
      %1734 = vmatprep.subr.bf16.mxu0 0
      %1735 = vmatpush1.bf16.msra.mxu0 0
      %1736 = vmatprep.subr.bf16.mxu0 0
      %1737 = vmatpush1.bf16.msra.mxu0 0
      %1738 = vmatprep.subr.bf16.mxu0 0
      %1739 = vmatpush1.bf16.msra.mxu0 0
      %1740 = vmatprep.subr.bf16.mxu0 0
      %1741 = vmatpush1.bf16.msra.mxu0 0
      %1742 = vmatprep.subr.bf16.mxu0 0
      %1743 = vmatpush1.bf16.msra.mxu0 0
      %1744 = vmatprep.subr.bf16.mxu0 0
      %1745 = vmatpush1.bf16.msra.mxu0 0
      %1746 = vmatprep.mubr.bf16.mxu0 0
      %1747 = vmatmul.mubr.bf16.gmra.mrb[0].mxu0 %v1697
      %v1748 = vpop.f32.mrb[0].mxu0
      %v1749 = vadd.f32 0.0, %v1748
      %v1750 = vpop.f32.mrb[0].mxu0
      %v1751 = vpop.f32.mrb[0].mxu0
      %v1752 = vadd.f32 0.0, %v1751
      %v1753 = vpop.f32.mrb[0].mxu0
      %1754 = vmatprep.mubr.bf16.mxu0 0
      %1755 = vmatmul.mubr.bf16.gmra.mrb[0].mxu0 %v1700
      %v1756 = vpop.f32.mrb[0].mxu0
      %v1757 = vadd.f32 0.0, %v1756
      %v1758 = vpop.f32.mrb[0].mxu0
      %v1759 = vpop.f32.mrb[0].mxu0
      %v1760 = vadd.f32 0.0, %v1759
      %v1761 = vpop.f32.mrb[0].mxu0
      %1762 = vmatprep.mubr.bf16.mxu0 0
      %1763 = vmatmul.mubr.bf16.gmra.mrb[0].mxu0 %v1703
      %v1764 = vpop.f32.mrb[0].mxu0
      %v1765 = vadd.f32 0.0, %v1764
      %v1766 = vpop.f32.mrb[0].mxu0
      %v1767 = vpop.f32.mrb[0].mxu0
      %v1768 = vadd.f32 0.0, %v1767
      %v1769 = vpop.f32.mrb[0].mxu0
      %1770 = vmatprep.mubr.bf16.mxu0 0
      %1771 = vmatmul.mubr.bf16.gmra.mrb[0].mxu0 %v1706
      %v1772 = vpop.f32.mrb[0].mxu0
      %v1773 = vadd.f32 0.0, %v1772
      %v1774 = vpop.f32.mrb[0].mxu0
      %v1775 = vpop.f32.mrb[0].mxu0
      %v1776 = vadd.f32 0.0, %v1775
      %v1777 = vpop.f32.mrb[0].mxu0
      %1778 = vmatprep.mubr.bf16.mxu0 0
      %1779 = vmatmul.mubr.bf16.gmra.mrb[0].mxu0 %v1709
      %v1780 = vpop.f32.mrb[0].mxu0
      %v1781 = vadd.f32 0.0, %v1780
      %v1782 = vpop.f32.mrb[0].mxu0
      %v1783 = vpop.f32.mrb[0].mxu0
      %v1784 = vpop.f32.mrb[0].mxu0
      %1785 = vdwg.mxu0
      %v1786 = vadd.f32 %v1641, %v1749
      %v1787 = vadd.f32 %v1642, %v1752
      %v1788 = vadd.f32 %v1643, %v1757
      %v1789 = vadd.f32 %v1644, %v1760
      %v1790 = vadd.f32 %v1645, %v1765
      %v1791 = vadd.f32 %v1646, %v1768
      %v1792 = vadd.f32 %v1647, %v1773
      %v1793 = vadd.f32 %v1648, %v1776
      %v1794 = vadd.f32 %v1649, %v1781
      %1795 = vst.msk [vmem:[#allocation2] sm:$0xff] %vm172, %v1786
      %1796 = vst.msk [vmem:[#allocation2 + $0x8] sm:$0xff] %vm172, %v1787
      %1797 = vst.msk [vmem:[#allocation2 + $0x10] sm:$0xff] %vm172, %v1788
      %1798 = vst.msk [vmem:[#allocation2 + $0x18] sm:$0xff] %vm172, %v1789
      %1799 = vst.msk [vmem:[#allocation2 + $0x20] sm:$0xff] %vm172, %v1790
      %1800 = vst.msk [vmem:[#allocation2 + $0x28] sm:$0xff] %vm172, %v1791
      %1801 = vst.msk [vmem:[#allocation2 + $0x30] sm:$0xff] %vm172, %v1792
      %1802 = vst.msk [vmem:[#allocation2 + $0x38] sm:$0xff] %vm172, %v1793
      %1803 = vst.msk [vmem:[#allocation2 + $0x40] sm:$0xff] %vm172, %v1794
      %v1804 = vld [vmem:[#allocation2] sm:$0xff]
      %v1805 = vld [vmem:[#allocation2 + $0x8] sm:$0xff]
      %v1806 = vld [vmem:[#allocation2 + $0x10] sm:$0xff]
      %v1807 = vld [vmem:[#allocation2 + $0x18] sm:$0xff]
      %v1808 = vld [vmem:[#allocation2 + $0x20] sm:$0xff]
      %v1809 = vld [vmem:[#allocation2 + $0x28] sm:$0xff]
      %v1810 = vld [vmem:[#allocation2 + $0x30] sm:$0xff]
      %v1811 = vld [vmem:[#allocation2 + $0x38] sm:$0xff]
      %v1812 = vld [vmem:[#allocation2 + $0x40] sm:$0xff]
      %v1813 = vld [vmem:[%s2] sm:$0x1]
      %v1815 = vlaneseq
      %v1816 = vshrl.u32 %v1815, 7
      %v1817 = vsub.s32 0, %v1816
      %v1818 = vrot.slane %v1813, %v1817
      %v1820 = vadd.f32 %v1804, %v1818
      %v1821 = vadd.f32 %v1805, %v1818
      %v1822 = vadd.f32 %v1806, %v1818
      %v1823 = vadd.f32 %v1807, %v1818
      %v1824 = vadd.f32 %v1808, %v1818
      %v1825 = vadd.f32 %v1809, %v1818
      %v1826 = vadd.f32 %v1810, %v1818
      %v1827 = vadd.f32 %v1811, %v1818
      %v1828 = vadd.f32 %v1812, %v1818
      %v1829 = vmax.f32 %v1820, 0.0
      %v1830 = vmax.f32 %v1821, 0.0
      %v1831 = vmax.f32 %v1822, 0.0
      %v1832 = vmax.f32 %v1823, 0.0
      %v1833 = vmax.f32 %v1824, 0.0
      %v1834 = vmax.f32 %v1825, 0.0
      %v1835 = vmax.f32 %v1826, 0.0
      %v1836 = vmax.f32 %v1827, 0.0
      %v1837 = vmax.f32 %v1828, 0.0
      %v1838 = vpack.c.bf16 %v1830, %v1829
      %v1839 = vpack.c.bf16 %v1832, %v1831
      %v1840 = vpack.c.bf16 %v1834, %v1833
      %v1841 = vpack.c.bf16 %v1836, %v1835
      %v1842 = vpack.c.bf16 %v1837, %v1837
      %vm1843 = vcmask 322560
      %1844 = vst.msk [vmem:[%s170] sm:$0xf] %vm1843, %v1838
      %v1847 = vunpack.c.h.b16 %v1838
      %v1848 = vunpack.c.l.b16 %v1839
      %v1849 = vpack.c.b16 %v1847, %v1847
      %v1850 = vpack.c.b16 %v1848, %v1848
      %vm1851 = vsmask.f32 3328
      %vm1852 = vsmask.f32 7440
      %vm1853 = vmor %vm1851, %vm1852
      %v1855 = vshrl.u32 %v1849, 16
      %v1857 = vrot.slane %v1855, 4
      %v1858 = vshll.u32 %v1849, 16
      %v1860 = vrot.slane %v1858, 5
      %v1861 = vor.u32 %v1857, %v1860
      %v1862 = vrot.slane %v1861, 4
      %v1864 = vshll.u32 %v1850, 16
      %v1866 = vrot.slane %v1864, 5
      %v1867 = vsel %vm1853, %v1862, %v1866
      %1869 = vst.msk [vmem:[%s170 + $0x4] sm:$0xf] %vm1843, %v1867
      %v1870 = vunpack.c.h.b16 %v1839
      %v1871 = vpack.c.b16 %v1870, %v1870
      %vm1872 = vcmask 1042432
      %vm1873 = vcmask 1046532
      %vm1874 = vmor %vm1872, %vm1873
      %v1875 = vrot.slane %v1850, 5
      %v1876 = vrot.slane %v1875, 4
      %v1877 = vrot.slane %v1871, 5
      %v1878 = vsel %vm1874, %v1876, %v1877
      %1880 = vst.msk [vmem:[%s170 + $0x8] sm:$0xf] %vm1843, %v1878
      %v1882 = vunpack.c.l.b16 %v1840
      %v1883 = vpack.c.b16 %v1882, %v1882
      %vm1884 = vsmask.f32 2304
      %vm1885 = vsmask.f32 6416
      %vm1886 = vmor %vm1884, %vm1885
      %v1888 = vshrl.u32 %v1871, 16
      %v1890 = vrot.slane %v1888, 5
      %v1891 = vshll.u32 %v1871, 16
      %v1893 = vrot.slane %v1891, 6
      %v1894 = vor.u32 %v1890, %v1893
      %v1895 = vrot.slane %v1894, 4
      %v1897 = vshrl.u32 %v1883, 16
      %v1899 = vrot.slane %v1897, 5
      %v1900 = vshll.u32 %v1883, 16
      %v1902 = vrot.slane %v1900, 6
      %v1903 = vor.u32 %v1899, %v1902
      %v1904 = vsel %vm1886, %v1895, %v1903
      %1906 = vst.msk [vmem:[%s170 + $0xc] sm:$0xf] %vm1843, %v1904
      %v1907 = vunpack.c.h.b16 %v1840
      %v1908 = vpack.c.b16 %v1907, %v1907
      %vm1909 = vcmask 1041408
      %vm1910 = vcmask 1045508
      %vm1911 = vmor %vm1909, %vm1910
      %v1912 = vrot.slane %v1883, 6
      %v1913 = vrot.slane %v1912, 4
      %v1914 = vrot.slane %v1908, 6
      %v1915 = vsel %vm1911, %v1913, %v1914
      %1917 = vst.msk [vmem:[%s170 + $0x10] sm:$0xf] %vm1843, %v1915
      %v1919 = vunpack.c.l.b16 %v1841
      %v1920 = vpack.c.b16 %v1919, %v1919
      %vm1921 = vsmask.f32 1280
      %vm1922 = vsmask.f32 5392
      %vm1923 = vmor %vm1921, %vm1922
      %v1925 = vshrl.u32 %v1908, 16
      %v1927 = vrot.slane %v1925, 6
      %v1928 = vshll.u32 %v1908, 16
      %v1930 = vrot.slane %v1928, 7
      %v1931 = vor.u32 %v1927, %v1930
      %v1932 = vrot.slane %v1931, 4
      %v1934 = vshrl.u32 %v1920, 16
      %v1936 = vrot.slane %v1934, 6
      %v1937 = vshll.u32 %v1920, 16
      %v1939 = vrot.slane %v1937, 7
      %v1940 = vor.u32 %v1936, %v1939
      %v1941 = vsel %vm1923, %v1932, %v1940
      %1943 = vst.msk [vmem:[%s170 + $0x14] sm:$0xf] %vm1843, %v1941
      %v1944 = vunpack.c.h.b16 %v1841
      %v1945 = vpack.c.b16 %v1944, %v1944
      %vm1946 = vcmask 1040384
      %vm1947 = vcmask 1044484
      %vm1948 = vmor %vm1946, %vm1947
      %v1949 = vrot.slane %v1920, 7
      %v1950 = vrot.slane %v1949, 4
      %v1951 = vrot.slane %v1945, 7
      %v1952 = vsel %vm1948, %v1950, %v1951
      %1954 = vst.msk [vmem:[%s170 + $0x18] sm:$0xf] %vm1843, %v1952
      %v1956 = vunpack.c.l.b16 %v1842
      %v1957 = vpack.c.b16 %v1956, %v1956
      %vm1958 = vsmask.f32 256
      %vm1959 = vsmask.f32 4368
      %vm1960 = vmor %vm1958, %vm1959
      %v1962 = vshrl.u32 %v1945, 16
      %v1964 = vrot.slane %v1962, 7
      %v1965 = vrot.slane %v1964, 4
      %v1967 = vshrl.u32 %v1957, 16
      %v1969 = vrot.slane %v1967, 7
      %v1970 = vshll.u32 %v1957, 16
      %v1972 = vor.u32 %v1969, %v1970
      %v1973 = vsel %vm1960, %v1965, %v1972
      %1975 = vst.msk [vmem:[%s170 + $0x1c] sm:$0xf] %vm1843, %v1973
      %p1976 = scmp.lt.s32.totalorder %s14, 1
      %s1977 = scalar_select %p1976, %s14, 1
      %s1978 = smul.addr %s1977, 8
      %s1979 = smul.addr %s1978, 4
      %s1980 = scalar_lea.vmem %s3, %s1979
      // Predicated region
      $region33: #{tpu_custom_call.1} parent=31 // pred_check
        %p1981 = pneg %p100
      $region34: #{tpu_custom_call.1} parent=31 // pred_check_branch
        %1983 = sbr.rel (%p1981) target = $region36
      $region35: #{tpu_custom_call.1} parent=31 // pred_region
        _
      $region36: #{tpu_custom_call.1} parent=31 // pred_fallthru
        _
    $region32: #{tpu_custom_call.1} parent=5 // pred_fallthru
      _
    %p1984 = scmp.le.s32.totalorder 2, %s9
    // Predicated region
    $region37: #{tpu_custom_call.1} parent=5 // pred_check
      %p1985 = pneg %p1984
    $region38: #{tpu_custom_call.1} parent=5 // pred_check_branch
      %1987 = sbr.rel (%p1985) target = $region40
    $region39: #{tpu_custom_call.1} parent=5 // pred_region
      %s1988 = ssub.s32 %s9, 2
      // Predicated region
      $region41: #{tpu_custom_call.1} parent=39 // pred_check
        %p1989 = pneg %p106
      $region42: #{tpu_custom_call.1} parent=39 // pred_check_branch
        %1991 = sbr.rel (%p1989) target = $region44
      $region43: #{tpu_custom_call.1} parent=39 // pred_region
        %p1992 = scmp.lt.s32.totalorder %s15, 1
        %s1993 = scalar_select %p1992, %s15, 1
        %s1994 = smul.addr %s1993, 8
        %s1995 = smul.addr %s1994, 4
        %s1996 = scalar_lea.vmem %s3, %s1995
      $region44: #{tpu_custom_call.1} parent=39 // pred_fallthru
        _
    $region40: #{tpu_custom_call.1} parent=5 // pred_fallthru
      _
  $region6: #{tpu_custom_call.1} parent=0 // loop_footer
    %s13 = sadd.s32 1, %s9
  $region7: #{tpu_custom_call.1} parent=0 // loop_footer_branch
    %8 = sbr.rel target = $region3
  $region8: #{tpu_custom_call.1} parent=0 // loop_exit
    _

</llo_original>
